<compile_context>
chip_gen: v7x
topology: tpu7x:2x2x1
jax: 0.10.0
libtpu: 0.0.40
codegen_flags: <defaults>
</compile_context>

<pallas_src>
import functools

import jax
import jax.numpy as jnp
from jax.experimental import pallas as pl
from jax.experimental.pallas import tpu as pltpu


def _round_up(x, m):
    return (x + m - 1) // m * m


# ----------------------------------------------------------------------------
# Pallas kernel: matmul + bias + 2x2-maxpool-over-lane-groups + activation
# ----------------------------------------------------------------------------
def _conv_pool_act_kernel(x_ref, w_ref, b_ref, o_ref, *, group, cout, act):
    """x: [TM, K], w: [K, 4*group], b: [1, 4*group], o: [TM, cout].

    Lane layout of the matmul result: column pos*group + c holds the conv
    output of pool-window position `pos` (of 4) and channel c, so the 2x2
    max-pool is a max over four static 32-lane groups.
    """
    y = jnp.dot(x_ref[...], w_ref[...], preferred_element_type=jnp.float32)
    y = y + b_ref[...]
    m = jnp.maximum(
        jnp.maximum(y[:, 0 * group:1 * group], y[:, 1 * group:2 * group]),
        jnp.maximum(y[:, 2 * group:3 * group], y[:, 3 * group:4 * group]),
    )
    if act == "relu":
        m = jnp.maximum(m, 0.0)
    else:
        # sigmoid; approx=True would push the reciprocal to the EUP slot but its
        # ~2^-12 relative error breaks the tight parity check against XLA below.
        m = pl.reciprocal(1.0 + jnp.exp(-m), approx=False)
    o_ref[...] = m[:, :cout]


def _fused_conv_pool_act(patches, w_e, b_e, *, cout, act, tm=512):
    """patches: (M, K) f32, w_e: (K, 128) f32, b_e: (1, 128) f32 -> (M, cout)."""
    m_rows, k = patches.shape
    n_lanes = w_e.shape[1]           # 4 * group == 128
    group = n_lanes // 4

    m_pad = _round_up(m_rows, 8)
    tm = min(tm, m_pad)
    m_pad = _round_up(m_pad, tm)
    if m_pad != m_rows:
        patches = jnp.pad(patches, ((0, m_pad - m_rows), (0, 0)))

    kernel = functools.partial(_conv_pool_act_kernel,
                               group=group, cout=cout, act=act)
    out = pl.pallas_call(
        kernel,
        out_shape=jax.ShapeDtypeStruct((m_pad, cout), jnp.float32),
        grid_spec=pltpu.PrefetchScalarGridSpec(
            num_scalar_prefetch=0,
            grid=(m_pad // tm,),
            in_specs=[
                pl.BlockSpec((tm, k), lambda i: (i, 0)),       # patch rows: tiled
                pl.BlockSpec((k, n_lanes), lambda i: (0, 0)),  # weights: resident
                pl.BlockSpec((1, n_lanes), lambda i: (0, 0)),  # bias: resident
            ],
            out_specs=pl.BlockSpec((tm, cout), lambda i: (i, 0)),
        ),
        compiler_params=pltpu.CompilerParams(
            dimension_semantics=("parallel",),
            vmem_limit_bytes=32 * 1024 * 1024,
        ),
    )(patches, w_e, b_e)
    return out[:m_rows]


# ----------------------------------------------------------------------------
# Glue (plain JAX): pool-window im2col + expanded weights
# ----------------------------------------------------------------------------
def _pool_window_patches(x):
    """Channels-last x: (N, H, W, Cin) -> ((N*PH*PW, 36*Cin), PH, PW).

    Each row is the 6x6xCin input window that feeds one 2x2 pool window of a
    valid 5x5 convolution (PH = PW = (H-4)//2)."""
    n, h, w, cin = x.shape
    ph, pw = (h - 4) // 2, (w - 4) // 2
    cols = []
    for u in range(6):
        for v in range(6):
            cols.append(x[:, u:u + 2 * ph - 1:2, v:v + 2 * pw - 1:2, :])
    p = jnp.stack(cols, axis=3)                    # (N, PH, PW, 36, Cin)
    return p.reshape(n * ph * pw, 36 * cin), ph, pw


def _expand_weights(w):
    """OIHW (Cout, Cin, 5, 5) -> (36*Cin, 128).

    Column pos*32 + c produces, from a 6x6xCin pool-window patch, the conv
    output of position pos = di*2+dj inside the 2x2 pool window for channel c
    (zero columns past Cout)."""
    cout, cin, kh, kw = w.shape
    assert kh == 5 and kw == 5 and cout <= 32
    blk = jnp.transpose(w, (2, 3, 1, 0)).astype(jnp.float32)   # (5, 5, Cin, Cout)
    we = jnp.zeros((6, 6, cin, 4, 32), jnp.float32)
    for di in range(2):
        for dj in range(2):
            pos = di * 2 + dj
            we = we.at[di:di + 5, dj:dj + 5, :, pos, :cout].set(blk)
    return we.reshape(36 * cin, 128)


def _expand_bias(b):
    cout = b.shape[0]
    be = jnp.zeros((4, 32), jnp.float32).at[:, :cout].set(
        b.astype(jnp.float32)[None, :])
    return be.reshape(1, 128)


def _pad_k(patches, w_e, mult=8):
    k = patches.shape[1]
    k_pad = _round_up(k, mult)
    if k_pad != k:
        patches = jnp.pad(patches, ((0, 0), (0, k_pad - k)))
        w_e = jnp.pad(w_e, ((0, k_pad - k), (0, 0)))
    return patches, w_e


# ----------------------------------------------------------------------------
# FeatureExtractor forward
# ----------------------------------------------------------------------------
@jax.jit
def feature_extractor_forward(x, w1, b1, w2, b2):
    n = x.shape[0]
    assert x.shape[1:] == (1, 28, 28)
    xl = jnp.transpose(x, (0, 2, 3, 1)).astype(jnp.float32)        # NHWC, Cin=1

    # stage 1: conv1(5x5, 1->32) + maxpool2 + relu  (fused in one kernel)
    p1, ph1, pw1 = _pool_window_patches(xl)                        # (N*144, 36)
    w1e, b1e = _expand_weights(w1), _expand_bias(b1)               # (36,128),(1,128)
    p1, w1e = _pad_k(p1, w1e)                                      # K: 36 -> 40
    h1 = _fused_conv_pool_act(p1, w1e, b1e, cout=32, act="relu")   # (N*144, 32)
    h1 = h1.reshape(n, ph1, pw1, 32)                               # (N,12,12,32)

    # stage 2: conv2(5x5, 32->20) + dropout2d(eval=identity) + maxpool2 + sigmoid
    p2, ph2, pw2 = _pool_window_patches(h1)                        # (N*16, 1152)
    w2e, b2e = _expand_weights(w2), _expand_bias(b2)               # (1152,128),(1,128)
    h2 = _fused_conv_pool_act(p2, w2e, b2e, cout=20, act="sigmoid")  # (N*16, 20)
    h2 = h2.reshape(n, ph2, pw2, 20)                               # (N,4,4,20) NHWC

    # PyTorch .view(-1, 320) flattens in NCHW order -> one tiny final transpose.
    return jnp.transpose(h2, (0, 3, 1, 2)).reshape(-1, 320)


# ----------------------------------------------------------------------------
# Pure-JAX reference (sanity check)
# ----------------------------------------------------------------------------
def _reference_forward(x, w1, b1, w2, b2):
    dn = ("NCHW", "OIHW", "NCHW")
    y = jax.lax.conv_general_dilated(x, w1, (1, 1), "VALID", dimension_numbers=dn)
    y = y + b1[None, :, None, None]
    y = jax.lax.reduce_window(y, -jnp.inf, jax.lax.max,
                              (1, 1, 2, 2), (1, 1, 2, 2), "VALID")
    y = jnp.maximum(y, 0.0)
    y = jax.lax.conv_general_dilated(y, w2, (1, 1), "VALID", dimension_numbers=dn)
    y = y + b2[None, :, None, None]
    y = jax.lax.reduce_window(y, -jnp.inf, jax.lax.max,
                              (1, 1, 2, 2), (1, 1, 2, 2), "VALID")
    y = jax.nn.sigmoid(y)
    return y.reshape(-1, 320)


if __name__ == "__main__":
    key = jax.random.PRNGKey(0)
    k_x, k_w1, k_b1, k_w2, k_b2 = jax.random.split(key, 5)

    # .view(-1, 320) forces 28x28 single-channel inputs (MNIST-like).
    N = 2
    x = jax.random.normal(k_x, (N, 1, 28, 28), dtype=jnp.float32)

    def uniform(k, shape, fan_in):
        bound = 1.0 / jnp.sqrt(jnp.float32(fan_in))
        return jax.random.uniform(k, shape, jnp.float32, -bound, bound)

    w1 = uniform(k_w1, (32, 1, 5, 5), 1 * 5 * 5)
    b1 = uniform(k_b1, (32,), 1 * 5 * 5)
    w2 = uniform(k_w2, (20, 32, 5, 5), 32 * 5 * 5)
    b2 = uniform(k_b2, (20,), 32 * 5 * 5)

    out = jax.block_until_ready(feature_extractor_forward(x, w1, b1, w2, b2))
    ref = _reference_forward(x, w1, b1, w2, b2)

    assert out.shape == (N, 320), out.shape
    assert jnp.allclose(out, ref, rtol=1e-4, atol=2e-5), "mismatch vs reference"

    print("KERNEL_OK")
</pallas_src>

<mosaic_0001>
module attributes {stable_mosaic.version = 11 : i64} {
  func.func @_conv_pool_act_kernel(%arg0: i32, %arg1: memref<288x40xf32, #tpu.memory_space<vmem>>, %arg2: memref<40x128xf32, #tpu.memory_space<vmem>>, %arg3: memref<1x128xf32, #tpu.memory_space<vmem>>, %arg4: memref<288x32xf32, #tpu.memory_space<vmem>>) attributes {dimension_semantics = [#tpu.dimension_semantics<parallel>], iteration_bounds = array<i64: 1>, scalar_prefetch = 0 : i64, scratch_operands = 0 : i64, tpu.core_type = #tpu.core_type<tc>, window_params = [{transform_indices = @transform_0, window_bounds = array<i64: 288, 40>}, {pipeline_mode = #tpu.pipeline_mode<synchronous>, transform_indices = @transform_1, window_bounds = array<i64: 40, 128>}, {pipeline_mode = #tpu.pipeline_mode<synchronous>, transform_indices = @transform_2, window_bounds = array<i64: 1, 128>}, {transform_indices = @transform_3, window_bounds = array<i64: 288, 32>}]} {
    %c0 = arith.constant 0 : index
    %c0_0 = arith.constant 0 : index
    %0 = vector.load %arg1[%c0, %c0_0] : memref<288x40xf32, #tpu.memory_space<vmem>>, vector<288x40xf32>
    %c0_1 = arith.constant 0 : index
    %c0_2 = arith.constant 0 : index
    %1 = vector.load %arg2[%c0_1, %c0_2] : memref<40x128xf32, #tpu.memory_space<vmem>>, vector<40x128xf32>
    %cst = arith.constant dense<0.000000e+00> : vector<288x128xf32>
    %2 = tpu.matmul %0, %1, %cst {dimension_numbers = #tpu.dot_dimension_numbers<[1], [0], [0], [1], [0, 0, 1, 1], [], []>} : vector<288x40xf32>, vector<40x128xf32>, vector<288x128xf32> -> vector<288x128xf32>
    %c0_3 = arith.constant 0 : index
    %c0_4 = arith.constant 0 : index
    %3 = vector.load %arg3[%c0_3, %c0_4] : memref<1x128xf32, #tpu.memory_space<vmem>>, vector<1x128xf32>
    %4 = vector.broadcast %3 : vector<1x128xf32> to vector<288x128xf32>
    %5 = arith.addf %2, %4 : vector<288x128xf32>
    %6 = vector.extract_strided_slice %5 {offsets = [0, 0], sizes = [288, 32], strides = [1, 1]} : vector<288x128xf32> to vector<288x32xf32>
    %7 = vector.extract_strided_slice %5 {offsets = [0, 32], sizes = [288, 32], strides = [1, 1]} : vector<288x128xf32> to vector<288x32xf32>
    %8 = arith.maximumf %6, %7 : vector<288x32xf32>
    %9 = vector.extract_strided_slice %5 {offsets = [0, 64], sizes = [288, 32], strides = [1, 1]} : vector<288x128xf32> to vector<288x32xf32>
    %10 = vector.extract_strided_slice %5 {offsets = [0, 96], sizes = [288, 32], strides = [1, 1]} : vector<288x128xf32> to vector<288x32xf32>
    %11 = arith.maximumf %9, %10 : vector<288x32xf32>
    %12 = arith.maximumf %8, %11 : vector<288x32xf32>
    %cst_5 = arith.constant 0.000000e+00 : f32
    %13 = vector.broadcast %cst_5 : f32 to vector<288x32xf32>
    %14 = arith.maximumf %12, %13 : vector<288x32xf32>
    %c0_6 = arith.constant 0 : index
    %c0_7 = arith.constant 0 : index
    %15 = vector.load %arg4[%c0_6, %c0_7] : memref<288x32xf32, #tpu.memory_space<vmem>>, vector<288x32xf32>
    tpu.vector_store %arg4[%c0_6, %c0_7], %14 {strides = array<i32>} : memref<288x32xf32, #tpu.memory_space<vmem>>, vector<288x32xf32>,
    return
  }
  func.func @transform_0(%arg0: i32) -> (i32, i32) {
    %c0_i32 = arith.constant 0 : i32
    %c0_i32_0 = arith.constant 0 : i32
    return %arg0, %c0_i32 : i32, i32
  }
  func.func @transform_1(%arg0: i32) -> (i32, i32) {
    %c0_i32 = arith.constant 0 : i32
    %c0_i32_0 = arith.constant 0 : i32
    %c0_i32_1 = arith.constant 0 : i32
    return %c0_i32, %c0_i32_0 : i32, i32
  }
  func.func @transform_2(%arg0: i32) -> (i32, i32) {
    %c0_i32 = arith.constant 0 : i32
    %c0_i32_0 = arith.constant 0 : i32
    %c0_i32_1 = arith.constant 0 : i32
    return %c0_i32, %c0_i32_0 : i32, i32
  }
  func.func @transform_3(%arg0: i32) -> (i32, i32) {
    %c0_i32 = arith.constant 0 : i32
    %c0_i32_0 = arith.constant 0 : i32
    return %arg0, %c0_i32 : i32, i32
  }
}

module attributes {stable_mosaic.version = 11 : i64} {
  func.func @_conv_pool_act_kernel(%arg0: i32, %arg1: memref<32x1152xf32, #tpu.memory_space<vmem>>, %arg2: memref<1152x128xf32, #tpu.memory_space<vmem>>, %arg3: memref<1x128xf32, #tpu.memory_space<vmem>>, %arg4: memref<32x20xf32, #tpu.memory_space<vmem>>) attributes {dimension_semantics = [#tpu.dimension_semantics<parallel>], iteration_bounds = array<i64: 1>, scalar_prefetch = 0 : i64, scratch_operands = 0 : i64, tpu.core_type = #tpu.core_type<tc>, window_params = [{transform_indices = @transform_0, window_bounds = array<i64: 32, 1152>}, {pipeline_mode = #tpu.pipeline_mode<synchronous>, transform_indices = @transform_1, window_bounds = array<i64: 1152, 128>}, {pipeline_mode = #tpu.pipeline_mode<synchronous>, transform_indices = @transform_2, window_bounds = array<i64: 1, 128>}, {transform_indices = @transform_3, window_bounds = array<i64: 32, 20>}]} {
    %c0 = arith.constant 0 : index
    %c0_0 = arith.constant 0 : index
    %0 = vector.load %arg1[%c0, %c0_0] : memref<32x1152xf32, #tpu.memory_space<vmem>>, vector<32x1152xf32>
    %c0_1 = arith.constant 0 : index
    %c0_2 = arith.constant 0 : index
    %1 = vector.load %arg2[%c0_1, %c0_2] : memref<1152x128xf32, #tpu.memory_space<vmem>>, vector<1152x128xf32>
    %cst = arith.constant dense<0.000000e+00> : vector<32x128xf32>
    %2 = tpu.matmul %0, %1, %cst {dimension_numbers = #tpu.dot_dimension_numbers<[1], [0], [0], [1], [0, 0, 1, 1], [], []>} : vector<32x1152xf32>, vector<1152x128xf32>, vector<32x128xf32> -> vector<32x128xf32>
    %c0_3 = arith.constant 0 : index
    %c0_4 = arith.constant 0 : index
    %3 = vector.load %arg3[%c0_3, %c0_4] : memref<1x128xf32, #tpu.memory_space<vmem>>, vector<1x128xf32>
    %4 = vector.broadcast %3 : vector<1x128xf32> to vector<32x128xf32>
    %5 = arith.addf %2, %4 : vector<32x128xf32>
    %6 = vector.extract_strided_slice %5 {offsets = [0, 0], sizes = [32, 32], strides = [1, 1]} : vector<32x128xf32> to vector<32x32xf32>
    %7 = vector.extract_strided_slice %5 {offsets = [0, 32], sizes = [32, 32], strides = [1, 1]} : vector<32x128xf32> to vector<32x32xf32>
    %8 = arith.maximumf %6, %7 : vector<32x32xf32>
    %9 = vector.extract_strided_slice %5 {offsets = [0, 64], sizes = [32, 32], strides = [1, 1]} : vector<32x128xf32> to vector<32x32xf32>
    %10 = vector.extract_strided_slice %5 {offsets = [0, 96], sizes = [32, 32], strides = [1, 1]} : vector<32x128xf32> to vector<32x32xf32>
    %11 = arith.maximumf %9, %10 : vector<32x32xf32>
    %12 = arith.maximumf %8, %11 : vector<32x32xf32>
    %cst_5 = arith.constant 0.000000e+00 : f32
    %13 = vector.broadcast %cst_5 : f32 to vector<32x32xf32>
    %14 = arith.subf %13, %12 : vector<32x32xf32>
    %15 = math.exp %14 : vector<32x32xf32>
    %cst_6 = arith.constant 1.000000e+00 : f32
    %16 = vector.broadcast %cst_6 : f32 to vector<32x32xf32>
    %17 = arith.addf %16, %15 : vector<32x32xf32>
    %18 = tpu.reciprocal %17 : vector<32x32xf32> -> vector<32x32xf32>
    %19 = vector.extract_strided_slice %18 {offsets = [0, 0], sizes = [32, 20], strides = [1, 1]} : vector<32x32xf32> to vector<32x20xf32>
    %c0_7 = arith.constant 0 : index
    %c0_8 = arith.constant 0 : index
    %20 = vector.load %arg4[%c0_7, %c0_8] : memref<32x20xf32, #tpu.memory_space<vmem>>, vector<32x20xf32>
    tpu.vector_store %arg4[%c0_7, %c0_8], %19 {strides = array<i32>} : memref<32x20xf32, #tpu.memory_space<vmem>>, vector<32x20xf32>,
    return
  }
  func.func @transform_0(%arg0: i32) -> (i32, i32) {
    %c0_i32 = arith.constant 0 : i32
    %c0_i32_0 = arith.constant 0 : i32
    return %arg0, %c0_i32 : i32, i32
  }
  func.func @transform_1(%arg0: i32) -> (i32, i32) {
    %c0_i32 = arith.constant 0 : i32
    %c0_i32_0 = arith.constant 0 : i32
    %c0_i32_1 = arith.constant 0 : i32
    return %c0_i32, %c0_i32_0 : i32, i32
  }
  func.func @transform_2(%arg0: i32) -> (i32, i32) {
    %c0_i32 = arith.constant 0 : i32
    %c0_i32_0 = arith.constant 0 : i32
    %c0_i32_1 = arith.constant 0 : i32
    return %c0_i32, %c0_i32_0 : i32, i32
  }
  func.func @transform_3(%arg0: i32) -> (i32, i32) {
    %c0_i32 = arith.constant 0 : i32
    %c0_i32_0 = arith.constant 0 : i32
    return %arg0, %c0_i32 : i32, i32
  }
}

</mosaic_0001>

<llo_original>
// kernel: feature_extractor_forward.2
$region0: #{feature_extractor_forward.2}
  #allocation0 [shape = 'u32[]', space=smem, size = 0x4, offset = 0x4, fixed_abs, tag = 'smem constant byte address 0x4 - core index']
  #allocation1 [shape = 'u32[144,128]{1,0:T(1,128)}', space=vmem, size = 0x12000, scoped, tag = 'internal scratch']
  %s0 = inlined_call_operand.vmem [shape: f32[288,40], index: 0, kind: input, shape index: {}]
  %s1 = inlined_call_operand.vmem [shape: f32[40,128], index: 1, kind: input, shape index: {}]
  %s2 = inlined_call_operand.vmem [shape: f32[1,128], index: 2, kind: input, shape index: {}]
  %s3 = inlined_call_operand.vmem [shape: f32[288,32], index: 3, kind: output, shape index: {}]
  %s4 = sld [smem:[#allocation0]]
  $region22: #{feature_extractor_forward.2} parent=0
    _
  %s6 = ssub.s32 1, %s4
  %s7 = scalar_select 0, %s6, %s4
  // Predicated region
  $region2: #{feature_extractor_forward.2} parent=0 // pred_check
    _
  $region3: #{feature_extractor_forward.2} parent=0 // pred_check_branch
    %9 = sbr.rel (0) target = $region5
  $region4: #{feature_extractor_forward.2} parent=0 // pred_region
    _
  $region5: #{feature_extractor_forward.2} parent=0 // pred_fallthru
    _
  // Predicated region
  $region6: #{feature_extractor_forward.2} parent=0 // pred_check
    _
  $region7: #{feature_extractor_forward.2} parent=0 // pred_check_branch
    %11 = sbr.rel (0) target = $region9
  $region8: #{feature_extractor_forward.2} parent=0 // pred_region
    _
  $region9: #{feature_extractor_forward.2} parent=0 // pred_fallthru
    _
  // Predicated region
  $region10: #{feature_extractor_forward.2} parent=0 // pred_check
    _
  $region11: #{feature_extractor_forward.2} parent=0 // pred_check_branch
    %13 = sbr.rel (0) target = $region13
  $region12: #{feature_extractor_forward.2} parent=0 // pred_region
    _
  $region13: #{feature_extractor_forward.2} parent=0 // pred_fallthru
    _
  %v14 = vld [vmem:[%s0] sm:$0xff]
  %v15 = vld [vmem:[%s0 + $0x8] sm:$0xff]
  %v16 = vld [vmem:[%s0 + $0x10] sm:$0xff]
  %v17 = vld [vmem:[%s0 + $0x18] sm:$0xff]
  %v18 = vld [vmem:[%s0 + $0x20] sm:$0xff]
  %v19 = vld [vmem:[%s0 + $0x28] sm:$0xff]
  %v20 = vld [vmem:[%s0 + $0x30] sm:$0xff]
  %v21 = vld [vmem:[%s0 + $0x38] sm:$0xff]
  %v22 = vld [vmem:[%s0 + $0x40] sm:$0xff]
  %v23 = vld [vmem:[%s0 + $0x48] sm:$0xff]
  %v24 = vld [vmem:[%s0 + $0x50] sm:$0xff]
  %v25 = vld [vmem:[%s0 + $0x58] sm:$0xff]
  %v26 = vld [vmem:[%s0 + $0x60] sm:$0xff]
  %v27 = vld [vmem:[%s0 + $0x68] sm:$0xff]
  %v28 = vld [vmem:[%s0 + $0x70] sm:$0xff]
  %v29 = vld [vmem:[%s0 + $0x78] sm:$0xff]
  %v30 = vld [vmem:[%s0 + $0x80] sm:$0xff]
  %v31 = vld [vmem:[%s0 + $0x88] sm:$0xff]
  %v32 = vld [vmem:[%s0 + $0x90] sm:$0xff]
  %v33 = vld [vmem:[%s0 + $0x98] sm:$0xff]
  %v34 = vld [vmem:[%s0 + $0xa0] sm:$0xff]
  %v35 = vld [vmem:[%s0 + $0xa8] sm:$0xff]
  %v36 = vld [vmem:[%s0 + $0xb0] sm:$0xff]
  %v37 = vld [vmem:[%s0 + $0xb8] sm:$0xff]
  %v38 = vld [vmem:[%s0 + $0xc0] sm:$0xff]
  %v39 = vld [vmem:[%s0 + $0xc8] sm:$0xff]
  %v40 = vld [vmem:[%s0 + $0xd0] sm:$0xff]
  %v41 = vld [vmem:[%s0 + $0xd8] sm:$0xff]
  %v42 = vld [vmem:[%s0 + $0xe0] sm:$0xff]
  %v43 = vld [vmem:[%s0 + $0xe8] sm:$0xff]
  %v44 = vld [vmem:[%s0 + $0xf0] sm:$0xff]
  %v45 = vld [vmem:[%s0 + $0xf8] sm:$0xff]
  %v46 = vld [vmem:[%s0 + $0x100] sm:$0xff]
  %v47 = vld [vmem:[%s0 + $0x108] sm:$0xff]
  %v48 = vld [vmem:[%s0 + $0x110] sm:$0xff]
  %v49 = vld [vmem:[%s0 + $0x118] sm:$0xff]
  %v50 = vld [vmem:[%s1] sm:$0xff]
  %v51 = vld [vmem:[%s1 + $0x8] sm:$0xff]
  %v52 = vld [vmem:[%s1 + $0x10] sm:$0xff]
  %v53 = vld [vmem:[%s1 + $0x18] sm:$0xff]
  %v54 = vld [vmem:[%s1 + $0x20] sm:$0xff]
  %v55 = vld [vmem:[%s2] sm:$0x1]
  %v57 = vlaneseq
  %v58 = vshrl.u32 %v57, 7
  %v59 = vsub.s32 0, %v58
  %v60 = vrot.slane %v55, %v59
  %vm62 = vcmask 326656
  %v64 = vsel %vm62, %v14, 0
  %v67 = vsel %vm62, %v15, 0
  %v70 = vsel %vm62, %v16, 0
  %v73 = vsel %vm62, %v17, 0
  %v76 = vsel %vm62, %v18, 0
  %v79 = vsel %vm62, %v19, 0
  %v82 = vsel %vm62, %v20, 0
  %v85 = vsel %vm62, %v21, 0
  %v88 = vsel %vm62, %v22, 0
  %v91 = vsel %vm62, %v23, 0
  %v94 = vsel %vm62, %v24, 0
  %v97 = vsel %vm62, %v25, 0
  %v100 = vsel %vm62, %v26, 0
  %v103 = vsel %vm62, %v27, 0
  %v106 = vsel %vm62, %v28, 0
  %v109 = vsel %vm62, %v29, 0
  %v112 = vsel %vm62, %v30, 0
  %v115 = vsel %vm62, %v31, 0
  %v118 = vsel %vm62, %v32, 0
  %v121 = vsel %vm62, %v33, 0
  %v124 = vsel %vm62, %v34, 0
  %v127 = vsel %vm62, %v35, 0
  %v130 = vsel %vm62, %v36, 0
  %v133 = vsel %vm62, %v37, 0
  %v136 = vsel %vm62, %v38, 0
  %v139 = vsel %vm62, %v39, 0
  %v142 = vsel %vm62, %v40, 0
  %v145 = vsel %vm62, %v41, 0
  %v148 = vsel %vm62, %v42, 0
  %v151 = vsel %vm62, %v43, 0
  %v154 = vsel %vm62, %v44, 0
  %v157 = vsel %vm62, %v45, 0
  %v160 = vsel %vm62, %v46, 0
  %v163 = vsel %vm62, %v47, 0
  %v166 = vsel %vm62, %v48, 0
  %v169 = vsel %vm62, %v49, 0
  %171 = vmatprep.subr.mxu0 0.0
  %172 = vmatpush1.msra.mxu0 %v50
  %173 = vmatprep.subr.mxu0 0.0
  %174 = vmatpush1.msra.mxu0 %v51
  %175 = vmatprep.subr.mxu0 0.0
  %176 = vmatpush1.msra.mxu0 %v52
  %177 = vmatprep.subr.mxu0 0.0
  %178 = vmatpush1.msra.mxu0 %v53
  %179 = vmatprep.subr.mxu0 0.0
  %180 = vmatpush1.msra.mxu0 %v54
  %181 = vmatprep.subr.mxu0 0.0
  %182 = vmatpush1.msra.mxu0 0.0
  %183 = vmatprep.subr.mxu0 0.0
  %184 = vmatpush1.msra.mxu0 0.0
  %185 = vmatprep.subr.mxu0 0.0
  %186 = vmatpush1.msra.mxu0 0.0
  %187 = vmatprep.subr.mxu0 0.0
  %188 = vmatpush1.msra.mxu0 0.0
  %189 = vmatprep.subr.mxu0 0.0
  %190 = vmatpush1.msra.mxu0 0.0
  %191 = vmatprep.subr.mxu0 0.0
  %192 = vmatpush1.msra.mxu0 0.0
  %193 = vmatprep.subr.mxu0 0.0
  %194 = vmatpush1.msra.mxu0 0.0
  %195 = vmatprep.subr.mxu0 0.0
  %196 = vmatpush1.msra.mxu0 0.0
  %197 = vmatprep.subr.mxu0 0.0
  %198 = vmatpush1.msra.mxu0 0.0
  %199 = vmatprep.subr.mxu0 0.0
  %200 = vmatpush1.msra.mxu0 0.0
  %201 = vmatprep.subr.mxu0 0.0
  %202 = vmatpush1.msra.mxu0 0.0
  %203 = vmatprep.subr.mxu0 0.0
  %204 = vmatpush1.msra.mxu0 0.0
  %205 = vmatprep.subr.mxu0 0.0
  %206 = vmatpush1.msra.mxu0 0.0
  %207 = vmatprep.subr.mxu0 0.0
  %208 = vmatpush1.msra.mxu0 0.0
  %209 = vmatprep.subr.mxu0 0.0
  %210 = vmatpush1.msra.mxu0 0.0
  %211 = vmatprep.subr.mxu0 0.0
  %212 = vmatpush1.msra.mxu0 0.0
  %213 = vmatprep.subr.mxu0 0.0
  %214 = vmatpush1.msra.mxu0 0.0
  %215 = vmatprep.subr.mxu0 0.0
  %216 = vmatpush1.msra.mxu0 0.0
  %217 = vmatprep.subr.mxu0 0.0
  %218 = vmatpush1.msra.mxu0 0.0
  %219 = vmatprep.subr.mxu0 0.0
  %220 = vmatpush1.msra.mxu0 0.0
  %221 = vmatprep.subr.mxu0 0.0
  %222 = vmatpush1.msra.mxu0 0.0
  %223 = vmatprep.subr.mxu0 0.0
  %224 = vmatpush1.msra.mxu0 0.0
  %225 = vmatprep.subr.mxu0 0.0
  %226 = vmatpush1.msra.mxu0 0.0
  %227 = vmatprep.subr.mxu0 0.0
  %228 = vmatpush1.msra.mxu0 0.0
  %229 = vmatprep.subr.mxu0 0.0
  %230 = vmatpush1.msra.mxu0 0.0
  %231 = vmatprep.subr.mxu0 0.0
  %232 = vmatpush1.msra.mxu0 0.0
  %233 = vmatprep.subr.mxu0 0.0
  %234 = vmatpush1.msra.mxu0 0.0
  %235 = vmatprep.mubr.f32.mxu0 0.0
  %236 = vmatmul.mubr.f32.gmra.mrb[0].mxu0 %v64
  %v237 = vpop.f32.mrb[0].mxu0
  %v238 = vadd.f32 %v60, %v237
  %v239 = vpop.f32.mrb[0].mxu0
  %240 = vmatprep.mubr.f32.mxu0 0.0
  %241 = vmatmul.mubr.f32.gmra.mrb[0].mxu0 %v67
  %v242 = vpop.f32.mrb[0].mxu0
  %v243 = vadd.f32 %v60, %v242
  %v244 = vpop.f32.mrb[0].mxu0
  %245 = vmatprep.mubr.f32.mxu0 0.0
  %246 = vmatmul.mubr.f32.gmra.mrb[0].mxu0 %v70
  %v247 = vpop.f32.mrb[0].mxu0
  %v248 = vadd.f32 %v60, %v247
  %v249 = vpop.f32.mrb[0].mxu0
  %250 = vmatprep.mubr.f32.mxu0 0.0
  %251 = vmatmul.mubr.f32.gmra.mrb[0].mxu0 %v73
  %v252 = vpop.f32.mrb[0].mxu0
  %v253 = vadd.f32 %v60, %v252
  %v254 = vpop.f32.mrb[0].mxu0
  %255 = vmatprep.mubr.f32.mxu0 0.0
  %256 = vmatmul.mubr.f32.gmra.mrb[0].mxu0 %v76
  %v257 = vpop.f32.mrb[0].mxu0
  %v258 = vadd.f32 %v60, %v257
  %v259 = vpop.f32.mrb[0].mxu0
  %260 = vmatprep.mubr.f32.mxu0 0.0
  %261 = vmatmul.mubr.f32.gmra.mrb[0].mxu0 %v79
  %v262 = vpop.f32.mrb[0].mxu0
  %v263 = vadd.f32 %v60, %v262
  %v264 = vpop.f32.mrb[0].mxu0
  %265 = vmatprep.mubr.f32.mxu0 0.0
  %266 = vmatmul.mubr.f32.gmra.mrb[0].mxu0 %v82
  %v267 = vpop.f32.mrb[0].mxu0
  %v268 = vadd.f32 %v60, %v267
  %v269 = vpop.f32.mrb[0].mxu0
  %270 = vmatprep.mubr.f32.mxu0 0.0
  %271 = vmatmul.mubr.f32.gmra.mrb[0].mxu0 %v85
  %v272 = vpop.f32.mrb[0].mxu0
  %v273 = vadd.f32 %v60, %v272
  %v274 = vpop.f32.mrb[0].mxu0
  %275 = vmatprep.mubr.f32.mxu0 0.0
  %276 = vmatmul.mubr.f32.gmra.mrb[0].mxu0 %v88
  %v277 = vpop.f32.mrb[0].mxu0
  %v278 = vadd.f32 %v60, %v277
  %v279 = vpop.f32.mrb[0].mxu0
  %280 = vmatprep.mubr.f32.mxu0 0.0
  %281 = vmatmul.mubr.f32.gmra.mrb[0].mxu0 %v91
  %v282 = vpop.f32.mrb[0].mxu0
  %v283 = vadd.f32 %v60, %v282
  %v284 = vpop.f32.mrb[0].mxu0
  %285 = vmatprep.mubr.f32.mxu0 0.0
  %286 = vmatmul.mubr.f32.gmra.mrb[0].mxu0 %v94
  %v287 = vpop.f32.mrb[0].mxu0
  %v288 = vadd.f32 %v60, %v287
  %v289 = vpop.f32.mrb[0].mxu0
  %290 = vmatprep.mubr.f32.mxu0 0.0
  %291 = vmatmul.mubr.f32.gmra.mrb[0].mxu0 %v97
  %v292 = vpop.f32.mrb[0].mxu0
  %v293 = vadd.f32 %v60, %v292
  %v294 = vpop.f32.mrb[0].mxu0
  %295 = vmatprep.mubr.f32.mxu0 0.0
  %296 = vmatmul.mubr.f32.gmra.mrb[0].mxu0 %v100
  %v297 = vpop.f32.mrb[0].mxu0
  %v298 = vadd.f32 %v60, %v297
  %v299 = vpop.f32.mrb[0].mxu0
  %300 = vmatprep.mubr.f32.mxu0 0.0
  %301 = vmatmul.mubr.f32.gmra.mrb[0].mxu0 %v103
  %v302 = vpop.f32.mrb[0].mxu0
  %v303 = vadd.f32 %v60, %v302
  %v304 = vpop.f32.mrb[0].mxu0
  %305 = vmatprep.mubr.f32.mxu0 0.0
  %306 = vmatmul.mubr.f32.gmra.mrb[0].mxu0 %v106
  %v307 = vpop.f32.mrb[0].mxu0
  %v308 = vadd.f32 %v60, %v307
  %v309 = vpop.f32.mrb[0].mxu0
  %310 = vmatprep.mubr.f32.mxu0 0.0
  %311 = vmatmul.mubr.f32.gmra.mrb[0].mxu0 %v109
  %v312 = vpop.f32.mrb[0].mxu0
  %v313 = vadd.f32 %v60, %v312
  %v314 = vpop.f32.mrb[0].mxu0
  %315 = vmatprep.mubr.f32.mxu0 0.0
  %316 = vmatmul.mubr.f32.gmra.mrb[0].mxu0 %v112
  %v317 = vpop.f32.mrb[0].mxu0
  %v318 = vadd.f32 %v60, %v317
  %v319 = vpop.f32.mrb[0].mxu0
  %320 = vmatprep.mubr.f32.mxu0 0.0
  %321 = vmatmul.mubr.f32.gmra.mrb[0].mxu0 %v115
  %v322 = vpop.f32.mrb[0].mxu0
  %v323 = vadd.f32 %v60, %v322
  %v324 = vpop.f32.mrb[0].mxu0
  %325 = vmatprep.mubr.f32.mxu0 0.0
  %326 = vmatmul.mubr.f32.gmra.mrb[0].mxu0 %v118
  %v327 = vpop.f32.mrb[0].mxu0
  %v328 = vadd.f32 %v60, %v327
  %v329 = vpop.f32.mrb[0].mxu0
  %330 = vmatprep.mubr.f32.mxu0 0.0
  %331 = vmatmul.mubr.f32.gmra.mrb[0].mxu0 %v121
  %v332 = vpop.f32.mrb[0].mxu0
  %v333 = vadd.f32 %v60, %v332
  %v334 = vpop.f32.mrb[0].mxu0
  %335 = vmatprep.mubr.f32.mxu0 0.0
  %336 = vmatmul.mubr.f32.gmra.mrb[0].mxu0 %v124
  %v337 = vpop.f32.mrb[0].mxu0
  %v338 = vadd.f32 %v60, %v337
  %v339 = vpop.f32.mrb[0].mxu0
  %340 = vmatprep.mubr.f32.mxu0 0.0
  %341 = vmatmul.mubr.f32.gmra.mrb[0].mxu0 %v127
  %v342 = vpop.f32.mrb[0].mxu0
  %v343 = vadd.f32 %v60, %v342
  %v344 = vpop.f32.mrb[0].mxu0
  %345 = vmatprep.mubr.f32.mxu0 0.0
  %346 = vmatmul.mubr.f32.gmra.mrb[0].mxu0 %v130
  %v347 = vpop.f32.mrb[0].mxu0
  %v348 = vadd.f32 %v60, %v347
  %v349 = vpop.f32.mrb[0].mxu0
  %350 = vmatprep.mubr.f32.mxu0 0.0
  %351 = vmatmul.mubr.f32.gmra.mrb[0].mxu0 %v133
  %v352 = vpop.f32.mrb[0].mxu0
  %v353 = vadd.f32 %v60, %v352
  %v354 = vpop.f32.mrb[0].mxu0
  %355 = vmatprep.mubr.f32.mxu0 0.0
  %356 = vmatmul.mubr.f32.gmra.mrb[0].mxu0 %v136
  %v357 = vpop.f32.mrb[0].mxu0
  %v358 = vadd.f32 %v60, %v357
  %v359 = vpop.f32.mrb[0].mxu0
  %360 = vmatprep.mubr.f32.mxu0 0.0
  %361 = vmatmul.mubr.f32.gmra.mrb[0].mxu0 %v139
  %v362 = vpop.f32.mrb[0].mxu0
  %v363 = vadd.f32 %v60, %v362
  %v364 = vpop.f32.mrb[0].mxu0
  %365 = vmatprep.mubr.f32.mxu0 0.0
  %366 = vmatmul.mubr.f32.gmra.mrb[0].mxu0 %v142
  %v367 = vpop.f32.mrb[0].mxu0
  %v368 = vadd.f32 %v60, %v367
  %v369 = vpop.f32.mrb[0].mxu0
  %370 = vmatprep.mubr.f32.mxu0 0.0
  %371 = vmatmul.mubr.f32.gmra.mrb[0].mxu0 %v145
  %v372 = vpop.f32.mrb[0].mxu0
  %v373 = vadd.f32 %v60, %v372
  %v374 = vpop.f32.mrb[0].mxu0
  %375 = vmatprep.mubr.f32.mxu0 0.0
  %376 = vmatmul.mubr.f32.gmra.mrb[0].mxu0 %v148
  %v377 = vpop.f32.mrb[0].mxu0
  %v378 = vadd.f32 %v60, %v377
  %v379 = vpop.f32.mrb[0].mxu0
  %380 = vmatprep.mubr.f32.mxu0 0.0
  %381 = vmatmul.mubr.f32.gmra.mrb[0].mxu0 %v151
  %v382 = vpop.f32.mrb[0].mxu0
  %v383 = vadd.f32 %v60, %v382
  %v384 = vpop.f32.mrb[0].mxu0
  %385 = vmatprep.mubr.f32.mxu0 0.0
  %386 = vmatmul.mubr.f32.gmra.mrb[0].mxu0 %v154
  %v387 = vpop.f32.mrb[0].mxu0
  %v388 = vadd.f32 %v60, %v387
  %v389 = vpop.f32.mrb[0].mxu0
  %390 = vmatprep.mubr.f32.mxu0 0.0
  %391 = vmatmul.mubr.f32.gmra.mrb[0].mxu0 %v157
  %v392 = vpop.f32.mrb[0].mxu0
  %v393 = vadd.f32 %v60, %v392
  %v394 = vpop.f32.mrb[0].mxu0
  %395 = vmatprep.mubr.f32.mxu0 0.0
  %396 = vmatmul.mubr.f32.gmra.mrb[0].mxu0 %v160
  %v397 = vpop.f32.mrb[0].mxu0
  %v398 = vadd.f32 %v60, %v397
  %v399 = vpop.f32.mrb[0].mxu0
  %400 = vmatprep.mubr.f32.mxu0 0.0
  %401 = vmatmul.mubr.f32.gmra.mrb[0].mxu0 %v163
  %v402 = vpop.f32.mrb[0].mxu0
  %v403 = vadd.f32 %v60, %v402
  %v404 = vpop.f32.mrb[0].mxu0
  %405 = vmatprep.mubr.f32.mxu0 0.0
  %406 = vmatmul.mubr.f32.gmra.mrb[0].mxu0 %v166
  %v407 = vpop.f32.mrb[0].mxu0
  %v408 = vadd.f32 %v60, %v407
  %v409 = vpop.f32.mrb[0].mxu0
  %410 = vmatprep.mubr.f32.mxu0 0.0
  %411 = vmatmul.mubr.f32.gmra.mrb[0].mxu0 %v169
  %v412 = vpop.f32.mrb[0].mxu0
  %v413 = vadd.f32 %v60, %v412
  %v414 = vpop.f32.mrb[0].mxu0
  %415 = vdwg.mxu0
  %452 = vrot.lane.b32.xlu0 %v238, 96
  %v453 = vpop.permute.xlu0 %452
  %454 = vrot.lane.b32.xlu0 %v243, 96
  %v455 = vpop.permute.xlu0 %454
  %456 = vrot.lane.b32.xlu0 %v248, 96
  %v457 = vpop.permute.xlu0 %456
  %458 = vrot.lane.b32.xlu0 %v253, 96
  %v459 = vpop.permute.xlu0 %458
  %460 = vrot.lane.b32.xlu0 %v258, 96
  %v461 = vpop.permute.xlu0 %460
  %462 = vrot.lane.b32.xlu0 %v263, 96
  %v463 = vpop.permute.xlu0 %462
  %464 = vrot.lane.b32.xlu0 %v268, 96
  %v465 = vpop.permute.xlu0 %464
  %466 = vrot.lane.b32.xlu0 %v273, 96
  %v467 = vpop.permute.xlu0 %466
  %468 = vrot.lane.b32.xlu0 %v278, 96
  %v469 = vpop.permute.xlu0 %468
  %470 = vrot.lane.b32.xlu0 %v283, 96
  %v471 = vpop.permute.xlu0 %470
  %472 = vrot.lane.b32.xlu0 %v288, 96
  %v473 = vpop.permute.xlu0 %472
  %474 = vrot.lane.b32.xlu0 %v293, 96
  %v475 = vpop.permute.xlu0 %474
  %476 = vrot.lane.b32.xlu0 %v298, 96
  %v477 = vpop.permute.xlu0 %476
  %478 = vrot.lane.b32.xlu0 %v303, 96
  %v479 = vpop.permute.xlu0 %478
  %480 = vrot.lane.b32.xlu0 %v308, 96
  %v481 = vpop.permute.xlu0 %480
  %482 = vrot.lane.b32.xlu0 %v313, 96
  %v483 = vpop.permute.xlu0 %482
  %484 = vrot.lane.b32.xlu0 %v318, 96
  %v485 = vpop.permute.xlu0 %484
  %486 = vrot.lane.b32.xlu0 %v323, 96
  %v487 = vpop.permute.xlu0 %486
  %488 = vrot.lane.b32.xlu0 %v328, 96
  %v489 = vpop.permute.xlu0 %488
  %490 = vrot.lane.b32.xlu0 %v333, 96
  %v491 = vpop.permute.xlu0 %490
  %492 = vrot.lane.b32.xlu0 %v338, 96
  %v493 = vpop.permute.xlu0 %492
  %494 = vrot.lane.b32.xlu0 %v343, 96
  %v495 = vpop.permute.xlu0 %494
  %496 = vrot.lane.b32.xlu0 %v348, 96
  %v497 = vpop.permute.xlu0 %496
  %498 = vrot.lane.b32.xlu0 %v353, 96
  %v499 = vpop.permute.xlu0 %498
  %500 = vrot.lane.b32.xlu0 %v358, 96
  %v501 = vpop.permute.xlu0 %500
  %502 = vrot.lane.b32.xlu0 %v363, 96
  %v503 = vpop.permute.xlu0 %502
  %504 = vrot.lane.b32.xlu0 %v368, 96
  %v505 = vpop.permute.xlu0 %504
  %506 = vrot.lane.b32.xlu0 %v373, 96
  %v507 = vpop.permute.xlu0 %506
  %508 = vrot.lane.b32.xlu0 %v378, 96
  %v509 = vpop.permute.xlu0 %508
  %510 = vrot.lane.b32.xlu0 %v383, 96
  %v511 = vpop.permute.xlu0 %510
  %512 = vrot.lane.b32.xlu0 %v388, 96
  %v513 = vpop.permute.xlu0 %512
  %514 = vrot.lane.b32.xlu0 %v393, 96
  %v515 = vpop.permute.xlu0 %514
  %516 = vrot.lane.b32.xlu0 %v398, 96
  %v517 = vpop.permute.xlu0 %516
  %518 = vrot.lane.b32.xlu0 %v403, 96
  %v519 = vpop.permute.xlu0 %518
  %520 = vrot.lane.b32.xlu0 %v408, 96
  %v521 = vpop.permute.xlu0 %520
  %522 = vrot.lane.b32.xlu0 %v413, 96
  %v523 = vpop.permute.xlu0 %522
  %v560 = vmax.f32 %v238, %v453
  %v561 = vmax.f32 %v243, %v455
  %v562 = vmax.f32 %v248, %v457
  %v563 = vmax.f32 %v253, %v459
  %v564 = vmax.f32 %v258, %v461
  %v565 = vmax.f32 %v263, %v463
  %v566 = vmax.f32 %v268, %v465
  %v567 = vmax.f32 %v273, %v467
  %v568 = vmax.f32 %v278, %v469
  %v569 = vmax.f32 %v283, %v471
  %v570 = vmax.f32 %v288, %v473
  %v571 = vmax.f32 %v293, %v475
  %v572 = vmax.f32 %v298, %v477
  %v573 = vmax.f32 %v303, %v479
  %v574 = vmax.f32 %v308, %v481
  %v575 = vmax.f32 %v313, %v483
  %v576 = vmax.f32 %v318, %v485
  %v577 = vmax.f32 %v323, %v487
  %v578 = vmax.f32 %v328, %v489
  %v579 = vmax.f32 %v333, %v491
  %v580 = vmax.f32 %v338, %v493
  %v581 = vmax.f32 %v343, %v495
  %v582 = vmax.f32 %v348, %v497
  %v583 = vmax.f32 %v353, %v499
  %v584 = vmax.f32 %v358, %v501
  %v585 = vmax.f32 %v363, %v503
  %v586 = vmax.f32 %v368, %v505
  %v587 = vmax.f32 %v373, %v507
  %v588 = vmax.f32 %v378, %v509
  %v589 = vmax.f32 %v383, %v511
  %v590 = vmax.f32 %v388, %v513
  %v591 = vmax.f32 %v393, %v515
  %v592 = vmax.f32 %v398, %v517
  %v593 = vmax.f32 %v403, %v519
  %v594 = vmax.f32 %v408, %v521
  %v595 = vmax.f32 %v413, %v523
  %632 = vrot.lane.b32.xlu0 %v560, 64
  %v633 = vpop.permute.xlu0 %632
  %634 = vrot.lane.b32.xlu0 %v561, 64
  %v635 = vpop.permute.xlu0 %634
  %636 = vrot.lane.b32.xlu0 %v562, 64
  %v637 = vpop.permute.xlu0 %636
  %638 = vrot.lane.b32.xlu0 %v563, 64
  %v639 = vpop.permute.xlu0 %638
  %640 = vrot.lane.b32.xlu0 %v564, 64
  %v641 = vpop.permute.xlu0 %640
  %642 = vrot.lane.b32.xlu0 %v565, 64
  %v643 = vpop.permute.xlu0 %642
  %644 = vrot.lane.b32.xlu0 %v566, 64
  %v645 = vpop.permute.xlu0 %644
  %646 = vrot.lane.b32.xlu0 %v567, 64
  %v647 = vpop.permute.xlu0 %646
  %648 = vrot.lane.b32.xlu0 %v568, 64
  %v649 = vpop.permute.xlu0 %648
  %650 = vrot.lane.b32.xlu0 %v569, 64
  %v651 = vpop.permute.xlu0 %650
  %652 = vrot.lane.b32.xlu0 %v570, 64
  %v653 = vpop.permute.xlu0 %652
  %654 = vrot.lane.b32.xlu0 %v571, 64
  %v655 = vpop.permute.xlu0 %654
  %656 = vrot.lane.b32.xlu0 %v572, 64
  %v657 = vpop.permute.xlu0 %656
  %658 = vrot.lane.b32.xlu0 %v573, 64
  %v659 = vpop.permute.xlu0 %658
  %660 = vrot.lane.b32.xlu0 %v574, 64
  %v661 = vpop.permute.xlu0 %660
  %662 = vrot.lane.b32.xlu0 %v575, 64
  %v663 = vpop.permute.xlu0 %662
  %664 = vrot.lane.b32.xlu0 %v576, 64
  %v665 = vpop.permute.xlu0 %664
  %666 = vrot.lane.b32.xlu0 %v577, 64
  %v667 = vpop.permute.xlu0 %666
  %668 = vrot.lane.b32.xlu0 %v578, 64
  %v669 = vpop.permute.xlu0 %668
  %670 = vrot.lane.b32.xlu0 %v579, 64
  %v671 = vpop.permute.xlu0 %670
  %672 = vrot.lane.b32.xlu0 %v580, 64
  %v673 = vpop.permute.xlu0 %672
  %674 = vrot.lane.b32.xlu0 %v581, 64
  %v675 = vpop.permute.xlu0 %674
  %676 = vrot.lane.b32.xlu0 %v582, 64
  %v677 = vpop.permute.xlu0 %676
  %678 = vrot.lane.b32.xlu0 %v583, 64
  %v679 = vpop.permute.xlu0 %678
  %680 = vrot.lane.b32.xlu0 %v584, 64
  %v681 = vpop.permute.xlu0 %680
  %682 = vrot.lane.b32.xlu0 %v585, 64
  %v683 = vpop.permute.xlu0 %682
  %684 = vrot.lane.b32.xlu0 %v586, 64
  %v685 = vpop.permute.xlu0 %684
  %686 = vrot.lane.b32.xlu0 %v587, 64
  %v687 = vpop.permute.xlu0 %686
  %688 = vrot.lane.b32.xlu0 %v588, 64
  %v689 = vpop.permute.xlu0 %688
  %690 = vrot.lane.b32.xlu0 %v589, 64
  %v691 = vpop.permute.xlu0 %690
  %692 = vrot.lane.b32.xlu0 %v590, 64
  %v693 = vpop.permute.xlu0 %692
  %694 = vrot.lane.b32.xlu0 %v591, 64
  %v695 = vpop.permute.xlu0 %694
  %696 = vrot.lane.b32.xlu0 %v592, 64
  %v697 = vpop.permute.xlu0 %696
  %698 = vrot.lane.b32.xlu0 %v593, 64
  %v699 = vpop.permute.xlu0 %698
  %700 = vrot.lane.b32.xlu0 %v594, 64
  %v701 = vpop.permute.xlu0 %700
  %702 = vrot.lane.b32.xlu0 %v595, 64
  %v703 = vpop.permute.xlu0 %702
  %v740 = vmax.f32 %v560, %v633
  %v741 = vmax.f32 %v561, %v635
  %v742 = vmax.f32 %v562, %v637
  %v743 = vmax.f32 %v563, %v639
  %v744 = vmax.f32 %v564, %v641
  %v745 = vmax.f32 %v565, %v643
  %v746 = vmax.f32 %v566, %v645
  %v747 = vmax.f32 %v567, %v647
  %v748 = vmax.f32 %v568, %v649
  %v749 = vmax.f32 %v569, %v651
  %v750 = vmax.f32 %v570, %v653
  %v751 = vmax.f32 %v571, %v655
  %v752 = vmax.f32 %v572, %v657
  %v753 = vmax.f32 %v573, %v659
  %v754 = vmax.f32 %v574, %v661
  %v755 = vmax.f32 %v575, %v663
  %v756 = vmax.f32 %v576, %v665
  %v757 = vmax.f32 %v577, %v667
  %v758 = vmax.f32 %v578, %v669
  %v759 = vmax.f32 %v579, %v671
  %v760 = vmax.f32 %v580, %v673
  %v761 = vmax.f32 %v581, %v675
  %v762 = vmax.f32 %v582, %v677
  %v763 = vmax.f32 %v583, %v679
  %v764 = vmax.f32 %v584, %v681
  %v765 = vmax.f32 %v585, %v683
  %v766 = vmax.f32 %v586, %v685
  %v767 = vmax.f32 %v587, %v687
  %v768 = vmax.f32 %v588, %v689
  %v769 = vmax.f32 %v589, %v691
  %v770 = vmax.f32 %v590, %v693
  %v771 = vmax.f32 %v591, %v695
  %v772 = vmax.f32 %v592, %v697
  %v773 = vmax.f32 %v593, %v699
  %v774 = vmax.f32 %v594, %v701
  %v775 = vmax.f32 %v595, %v703
  %v776 = vmax.f32 %v740, 0.0
  %v777 = vmax.f32 %v741, 0.0
  %v778 = vmax.f32 %v742, 0.0
  %v779 = vmax.f32 %v743, 0.0
  %v780 = vmax.f32 %v744, 0.0
  %v781 = vmax.f32 %v745, 0.0
  %v782 = vmax.f32 %v746, 0.0
  %v783 = vmax.f32 %v747, 0.0
  %v784 = vmax.f32 %v748, 0.0
  %v785 = vmax.f32 %v749, 0.0
  %v786 = vmax.f32 %v750, 0.0
  %v787 = vmax.f32 %v751, 0.0
  %v788 = vmax.f32 %v752, 0.0
  %v789 = vmax.f32 %v753, 0.0
  %v790 = vmax.f32 %v754, 0.0
  %v791 = vmax.f32 %v755, 0.0
  %v792 = vmax.f32 %v756, 0.0
  %v793 = vmax.f32 %v757, 0.0
  %v794 = vmax.f32 %v758, 0.0
  %v795 = vmax.f32 %v759, 0.0
  %v796 = vmax.f32 %v760, 0.0
  %v797 = vmax.f32 %v761, 0.0
  %v798 = vmax.f32 %v762, 0.0
  %v799 = vmax.f32 %v763, 0.0
  %v800 = vmax.f32 %v764, 0.0
  %v801 = vmax.f32 %v765, 0.0
  %v802 = vmax.f32 %v766, 0.0
  %v803 = vmax.f32 %v767, 0.0
  %v804 = vmax.f32 %v768, 0.0
  %v805 = vmax.f32 %v769, 0.0
  %v806 = vmax.f32 %v770, 0.0
  %v807 = vmax.f32 %v771, 0.0
  %v808 = vmax.f32 %v772, 0.0
  %v809 = vmax.f32 %v773, 0.0
  %v810 = vmax.f32 %v774, 0.0
  %v811 = vmax.f32 %v775, 0.0
  %vm812 = vcmask 261120
  %813 = vst.msk [vmem:[%s3] sm:$0xff] %vm812, %v776
  %814 = vst.msk [vmem:[%s3 + $0x8] sm:$0xff] %vm812, %v777
  %815 = vst.msk [vmem:[%s3 + $0x10] sm:$0xff] %vm812, %v778
  %816 = vst.msk [vmem:[%s3 + $0x18] sm:$0xff] %vm812, %v779
  %817 = vst.msk [vmem:[%s3 + $0x20] sm:$0xff] %vm812, %v780
  %818 = vst.msk [vmem:[%s3 + $0x28] sm:$0xff] %vm812, %v781
  %819 = vst.msk [vmem:[%s3 + $0x30] sm:$0xff] %vm812, %v782
  %820 = vst.msk [vmem:[%s3 + $0x38] sm:$0xff] %vm812, %v783
  %821 = vst.msk [vmem:[%s3 + $0x40] sm:$0xff] %vm812, %v784
  %822 = vst.msk [vmem:[%s3 + $0x48] sm:$0xff] %vm812, %v785
  %823 = vst.msk [vmem:[%s3 + $0x50] sm:$0xff] %vm812, %v786
  %824 = vst.msk [vmem:[%s3 + $0x58] sm:$0xff] %vm812, %v787
  %825 = vst.msk [vmem:[%s3 + $0x60] sm:$0xff] %vm812, %v788
  %826 = vst.msk [vmem:[%s3 + $0x68] sm:$0xff] %vm812, %v789
  %827 = vst.msk [vmem:[%s3 + $0x70] sm:$0xff] %vm812, %v790
  %828 = vst.msk [vmem:[%s3 + $0x78] sm:$0xff] %vm812, %v791
  %829 = vst.msk [vmem:[%s3 + $0x80] sm:$0xff] %vm812, %v792
  %830 = vst.msk [vmem:[%s3 + $0x88] sm:$0xff] %vm812, %v793
  %831 = vst.msk [vmem:[%s3 + $0x90] sm:$0xff] %vm812, %v794
  %832 = vst.msk [vmem:[%s3 + $0x98] sm:$0xff] %vm812, %v795
  %833 = vst.msk [vmem:[%s3 + $0xa0] sm:$0xff] %vm812, %v796
  %834 = vst.msk [vmem:[%s3 + $0xa8] sm:$0xff] %vm812, %v797
  %835 = vst.msk [vmem:[%s3 + $0xb0] sm:$0xff] %vm812, %v798
  %836 = vst.msk [vmem:[%s3 + $0xb8] sm:$0xff] %vm812, %v799
  %837 = vst.msk [vmem:[%s3 + $0xc0] sm:$0xff] %vm812, %v800
  %838 = vst.msk [vmem:[%s3 + $0xc8] sm:$0xff] %vm812, %v801
  %839 = vst.msk [vmem:[%s3 + $0xd0] sm:$0xff] %vm812, %v802
  %840 = vst.msk [vmem:[%s3 + $0xd8] sm:$0xff] %vm812, %v803
  %841 = vst.msk [vmem:[%s3 + $0xe0] sm:$0xff] %vm812, %v804
  %842 = vst.msk [vmem:[%s3 + $0xe8] sm:$0xff] %vm812, %v805
  %843 = vst.msk [vmem:[%s3 + $0xf0] sm:$0xff] %vm812, %v806
  %844 = vst.msk [vmem:[%s3 + $0xf8] sm:$0xff] %vm812, %v807
  %845 = vst.msk [vmem:[%s3 + $0x100] sm:$0xff] %vm812, %v808
  %846 = vst.msk [vmem:[%s3 + $0x108] sm:$0xff] %vm812, %v809
  %847 = vst.msk [vmem:[%s3 + $0x110] sm:$0xff] %vm812, %v810
  %848 = vst.msk [vmem:[%s3 + $0x118] sm:$0xff] %vm812, %v811
  // Predicated region
  $region14: #{feature_extractor_forward.2} parent=0 // pred_check
    _
  $region15: #{feature_extractor_forward.2} parent=0 // pred_check_branch
    %850 = sbr.rel (0) target = $region17
  $region16: #{feature_extractor_forward.2} parent=0 // pred_region
    _
  $region17: #{feature_extractor_forward.2} parent=0 // pred_fallthru
    _
  // Predicated region
  $region18: #{feature_extractor_forward.2} parent=0 // pred_check
    _
  $region19: #{feature_extractor_forward.2} parent=0 // pred_check_branch
    %852 = sbr.rel (0) target = $region21
  $region20: #{feature_extractor_forward.2} parent=0 // pred_region
    _
  $region21: #{feature_extractor_forward.2} parent=0 // pred_fallthru
    _

// kernel: feature_extractor_forward.3
$region0: #{feature_extractor_forward.3}
  #allocation0 [shape = 'u32[]', space=smem, size = 0x4, offset = 0x4, fixed_abs, tag = 'smem constant byte address 0x4 - core index']
  #allocation1 [shape = 'u32[144,128]{1,0:T(1,128)}', space=vmem, size = 0x12000, scoped, tag = 'internal scratch']
  %s0 = inlined_call_operand.vmem [shape: f32[32,1152], index: 0, kind: input, shape index: {}]
  %s1 = inlined_call_operand.vmem [shape: f32[1152,128], index: 1, kind: input, shape index: {}]
  %s2 = inlined_call_operand.vmem [shape: f32[1,128], index: 2, kind: input, shape index: {}]
  %s3 = inlined_call_operand.vmem [shape: f32[32,20], index: 3, kind: output, shape index: {}]
  %s4 = sld [smem:[#allocation0]]
  $region22: #{feature_extractor_forward.3} parent=0
    _
  %s6 = ssub.s32 1, %s4
  %s7 = scalar_select 0, %s6, %s4
  // Predicated region
  $region2: #{feature_extractor_forward.3} parent=0 // pred_check
    _
  $region3: #{feature_extractor_forward.3} parent=0 // pred_check_branch
    %9 = sbr.rel (0) target = $region5
  $region4: #{feature_extractor_forward.3} parent=0 // pred_region
    _
  $region5: #{feature_extractor_forward.3} parent=0 // pred_fallthru
    _
  // Predicated region
  $region6: #{feature_extractor_forward.3} parent=0 // pred_check
    _
  $region7: #{feature_extractor_forward.3} parent=0 // pred_check_branch
    %11 = sbr.rel (0) target = $region9
  $region8: #{feature_extractor_forward.3} parent=0 // pred_region
    _
  $region9: #{feature_extractor_forward.3} parent=0 // pred_fallthru
    _
  // Predicated region
  $region10: #{feature_extractor_forward.3} parent=0 // pred_check
    _
  $region11: #{feature_extractor_forward.3} parent=0 // pred_check_branch
    %13 = sbr.rel (0) target = $region13
  $region12: #{feature_extractor_forward.3} parent=0 // pred_region
    _
  $region13: #{feature_extractor_forward.3} parent=0 // pred_fallthru
    _
  %v14 = vld [vmem:[%s0] sm:$0xff]
  %v15 = vld [vmem:[%s0 + $0x8] sm:$0xff]
  %v16 = vld [vmem:[%s0 + $0x10] sm:$0xff]
  %v17 = vld [vmem:[%s0 + $0x18] sm:$0xff]
  %v18 = vld [vmem:[%s0 + $0x20] sm:$0xff]
  %v19 = vld [vmem:[%s0 + $0x28] sm:$0xff]
  %v20 = vld [vmem:[%s0 + $0x30] sm:$0xff]
  %v21 = vld [vmem:[%s0 + $0x38] sm:$0xff]
  %v22 = vld [vmem:[%s0 + $0x40] sm:$0xff]
  %v23 = vld [vmem:[%s0 + $0x48] sm:$0xff]
  %v24 = vld [vmem:[%s0 + $0x50] sm:$0xff]
  %v25 = vld [vmem:[%s0 + $0x58] sm:$0xff]
  %v26 = vld [vmem:[%s0 + $0x60] sm:$0xff]
  %v27 = vld [vmem:[%s0 + $0x68] sm:$0xff]
  %v28 = vld [vmem:[%s0 + $0x70] sm:$0xff]
  %v29 = vld [vmem:[%s0 + $0x78] sm:$0xff]
  %v30 = vld [vmem:[%s0 + $0x80] sm:$0xff]
  %v31 = vld [vmem:[%s0 + $0x88] sm:$0xff]
  %v32 = vld [vmem:[%s0 + $0x90] sm:$0xff]
  %v33 = vld [vmem:[%s0 + $0x98] sm:$0xff]
  %v34 = vld [vmem:[%s0 + $0xa0] sm:$0xff]
  %v35 = vld [vmem:[%s0 + $0xa8] sm:$0xff]
  %v36 = vld [vmem:[%s0 + $0xb0] sm:$0xff]
  %v37 = vld [vmem:[%s0 + $0xb8] sm:$0xff]
  %v38 = vld [vmem:[%s0 + $0xc0] sm:$0xff]
  %v39 = vld [vmem:[%s0 + $0xc8] sm:$0xff]
  %v40 = vld [vmem:[%s0 + $0xd0] sm:$0xff]
  %v41 = vld [vmem:[%s0 + $0xd8] sm:$0xff]
  %v42 = vld [vmem:[%s0 + $0xe0] sm:$0xff]
  %v43 = vld [vmem:[%s0 + $0xe8] sm:$0xff]
  %v44 = vld [vmem:[%s0 + $0xf0] sm:$0xff]
  %v45 = vld [vmem:[%s0 + $0xf8] sm:$0xff]
  %v46 = vld [vmem:[%s0 + $0x100] sm:$0xff]
  %v47 = vld [vmem:[%s0 + $0x108] sm:$0xff]
  %v48 = vld [vmem:[%s0 + $0x110] sm:$0xff]
  %v49 = vld [vmem:[%s0 + $0x118] sm:$0xff]
  %v50 = vld [vmem:[%s1] sm:$0xff]
  %v51 = vld [vmem:[%s1 + $0x8] sm:$0xff]
  %v52 = vld [vmem:[%s1 + $0x10] sm:$0xff]
  %v53 = vld [vmem:[%s1 + $0x18] sm:$0xff]
  %v54 = vld [vmem:[%s1 + $0x20] sm:$0xff]
  %v55 = vld [vmem:[%s1 + $0x28] sm:$0xff]
  %v56 = vld [vmem:[%s1 + $0x30] sm:$0xff]
  %v57 = vld [vmem:[%s1 + $0x38] sm:$0xff]
  %v58 = vld [vmem:[%s1 + $0x40] sm:$0xff]
  %v59 = vld [vmem:[%s1 + $0x48] sm:$0xff]
  %v60 = vld [vmem:[%s1 + $0x50] sm:$0xff]
  %v61 = vld [vmem:[%s1 + $0x58] sm:$0xff]
  %v62 = vld [vmem:[%s1 + $0x60] sm:$0xff]
  %v63 = vld [vmem:[%s1 + $0x68] sm:$0xff]
  %v64 = vld [vmem:[%s1 + $0x70] sm:$0xff]
  %v65 = vld [vmem:[%s1 + $0x78] sm:$0xff]
  %v66 = vld [vmem:[%s1 + $0x80] sm:$0xff]
  %v67 = vld [vmem:[%s1 + $0x88] sm:$0xff]
  %v68 = vld [vmem:[%s1 + $0x90] sm:$0xff]
  %v69 = vld [vmem:[%s1 + $0x98] sm:$0xff]
  %v70 = vld [vmem:[%s1 + $0xa0] sm:$0xff]
  %v71 = vld [vmem:[%s1 + $0xa8] sm:$0xff]
  %v72 = vld [vmem:[%s1 + $0xb0] sm:$0xff]
  %v73 = vld [vmem:[%s1 + $0xb8] sm:$0xff]
  %v74 = vld [vmem:[%s1 + $0xc0] sm:$0xff]
  %v75 = vld [vmem:[%s1 + $0xc8] sm:$0xff]
  %v76 = vld [vmem:[%s1 + $0xd0] sm:$0xff]
  %v77 = vld [vmem:[%s1 + $0xd8] sm:$0xff]
  %v78 = vld [vmem:[%s1 + $0xe0] sm:$0xff]
  %v79 = vld [vmem:[%s1 + $0xe8] sm:$0xff]
  %v80 = vld [vmem:[%s1 + $0xf0] sm:$0xff]
  %v81 = vld [vmem:[%s1 + $0xf8] sm:$0xff]
  %v82 = vld [vmem:[%s1 + $0x100] sm:$0xff]
  %v83 = vld [vmem:[%s1 + $0x108] sm:$0xff]
  %v84 = vld [vmem:[%s1 + $0x110] sm:$0xff]
  %v85 = vld [vmem:[%s1 + $0x118] sm:$0xff]
  %v86 = vld [vmem:[%s1 + $0x120] sm:$0xff]
  %v87 = vld [vmem:[%s1 + $0x128] sm:$0xff]
  %v88 = vld [vmem:[%s1 + $0x130] sm:$0xff]
  %v89 = vld [vmem:[%s1 + $0x138] sm:$0xff]
  %v90 = vld [vmem:[%s1 + $0x140] sm:$0xff]
  %v91 = vld [vmem:[%s1 + $0x148] sm:$0xff]
  %v92 = vld [vmem:[%s1 + $0x150] sm:$0xff]
  %v93 = vld [vmem:[%s1 + $0x158] sm:$0xff]
  %v94 = vld [vmem:[%s1 + $0x160] sm:$0xff]
  %v95 = vld [vmem:[%s1 + $0x168] sm:$0xff]
  %v96 = vld [vmem:[%s1 + $0x170] sm:$0xff]
  %v97 = vld [vmem:[%s1 + $0x178] sm:$0xff]
  %v98 = vld [vmem:[%s1 + $0x180] sm:$0xff]
  %v99 = vld [vmem:[%s1 + $0x188] sm:$0xff]
  %v100 = vld [vmem:[%s1 + $0x190] sm:$0xff]
  %v101 = vld [vmem:[%s1 + $0x198] sm:$0xff]
  %v102 = vld [vmem:[%s1 + $0x1a0] sm:$0xff]
  %v103 = vld [vmem:[%s1 + $0x1a8] sm:$0xff]
  %v104 = vld [vmem:[%s1 + $0x1b0] sm:$0xff]
  %v105 = vld [vmem:[%s1 + $0x1b8] sm:$0xff]
  %v106 = vld [vmem:[%s1 + $0x1c0] sm:$0xff]
  %v107 = vld [vmem:[%s1 + $0x1c8] sm:$0xff]
  %v108 = vld [vmem:[%s1 + $0x1d0] sm:$0xff]
  %v109 = vld [vmem:[%s1 + $0x1d8] sm:$0xff]
  %v110 = vld [vmem:[%s1 + $0x1e0] sm:$0xff]
  %v111 = vld [vmem:[%s1 + $0x1e8] sm:$0xff]
  %v112 = vld [vmem:[%s1 + $0x1f0] sm:$0xff]
  %v113 = vld [vmem:[%s1 + $0x1f8] sm:$0xff]
  %v114 = vld [vmem:[%s1 + $0x200] sm:$0xff]
  %v115 = vld [vmem:[%s1 + $0x208] sm:$0xff]
  %v116 = vld [vmem:[%s1 + $0x210] sm:$0xff]
  %v117 = vld [vmem:[%s1 + $0x218] sm:$0xff]
  %v118 = vld [vmem:[%s1 + $0x220] sm:$0xff]
  %v119 = vld [vmem:[%s1 + $0x228] sm:$0xff]
  %v120 = vld [vmem:[%s1 + $0x230] sm:$0xff]
  %v121 = vld [vmem:[%s1 + $0x238] sm:$0xff]
  %v122 = vld [vmem:[%s1 + $0x240] sm:$0xff]
  %v123 = vld [vmem:[%s1 + $0x248] sm:$0xff]
  %v124 = vld [vmem:[%s1 + $0x250] sm:$0xff]
  %v125 = vld [vmem:[%s1 + $0x258] sm:$0xff]
  %v126 = vld [vmem:[%s1 + $0x260] sm:$0xff]
  %v127 = vld [vmem:[%s1 + $0x268] sm:$0xff]
  %v128 = vld [vmem:[%s1 + $0x270] sm:$0xff]
  %v129 = vld [vmem:[%s1 + $0x278] sm:$0xff]
  %v130 = vld [vmem:[%s1 + $0x280] sm:$0xff]
  %v131 = vld [vmem:[%s1 + $0x288] sm:$0xff]
  %v132 = vld [vmem:[%s1 + $0x290] sm:$0xff]
  %v133 = vld [vmem:[%s1 + $0x298] sm:$0xff]
  %v134 = vld [vmem:[%s1 + $0x2a0] sm:$0xff]
  %v135 = vld [vmem:[%s1 + $0x2a8] sm:$0xff]
  %v136 = vld [vmem:[%s1 + $0x2b0] sm:$0xff]
  %v137 = vld [vmem:[%s1 + $0x2b8] sm:$0xff]
  %v138 = vld [vmem:[%s1 + $0x2c0] sm:$0xff]
  %v139 = vld [vmem:[%s1 + $0x2c8] sm:$0xff]
  %v140 = vld [vmem:[%s1 + $0x2d0] sm:$0xff]
  %v141 = vld [vmem:[%s1 + $0x2d8] sm:$0xff]
  %v142 = vld [vmem:[%s1 + $0x2e0] sm:$0xff]
  %v143 = vld [vmem:[%s1 + $0x2e8] sm:$0xff]
  %v144 = vld [vmem:[%s1 + $0x2f0] sm:$0xff]
  %v145 = vld [vmem:[%s1 + $0x2f8] sm:$0xff]
  %v146 = vld [vmem:[%s1 + $0x300] sm:$0xff]
  %v147 = vld [vmem:[%s1 + $0x308] sm:$0xff]
  %v148 = vld [vmem:[%s1 + $0x310] sm:$0xff]
  %v149 = vld [vmem:[%s1 + $0x318] sm:$0xff]
  %v150 = vld [vmem:[%s1 + $0x320] sm:$0xff]
  %v151 = vld [vmem:[%s1 + $0x328] sm:$0xff]
  %v152 = vld [vmem:[%s1 + $0x330] sm:$0xff]
  %v153 = vld [vmem:[%s1 + $0x338] sm:$0xff]
  %v154 = vld [vmem:[%s1 + $0x340] sm:$0xff]
  %v155 = vld [vmem:[%s1 + $0x348] sm:$0xff]
  %v156 = vld [vmem:[%s1 + $0x350] sm:$0xff]
  %v157 = vld [vmem:[%s1 + $0x358] sm:$0xff]
  %v158 = vld [vmem:[%s1 + $0x360] sm:$0xff]
  %v159 = vld [vmem:[%s1 + $0x368] sm:$0xff]
  %v160 = vld [vmem:[%s1 + $0x370] sm:$0xff]
  %v161 = vld [vmem:[%s1 + $0x378] sm:$0xff]
  %v162 = vld [vmem:[%s1 + $0x380] sm:$0xff]
  %v163 = vld [vmem:[%s1 + $0x388] sm:$0xff]
  %v164 = vld [vmem:[%s1 + $0x390] sm:$0xff]
  %v165 = vld [vmem:[%s1 + $0x398] sm:$0xff]
  %v166 = vld [vmem:[%s1 + $0x3a0] sm:$0xff]
  %v167 = vld [vmem:[%s1 + $0x3a8] sm:$0xff]
  %v168 = vld [vmem:[%s1 + $0x3b0] sm:$0xff]
  %v169 = vld [vmem:[%s1 + $0x3b8] sm:$0xff]
  %v170 = vld [vmem:[%s1 + $0x3c0] sm:$0xff]
  %v171 = vld [vmem:[%s1 + $0x3c8] sm:$0xff]
  %v172 = vld [vmem:[%s1 + $0x3d0] sm:$0xff]
  %v173 = vld [vmem:[%s1 + $0x3d8] sm:$0xff]
  %v174 = vld [vmem:[%s1 + $0x3e0] sm:$0xff]
  %v175 = vld [vmem:[%s1 + $0x3e8] sm:$0xff]
  %v176 = vld [vmem:[%s1 + $0x3f0] sm:$0xff]
  %v177 = vld [vmem:[%s1 + $0x3f8] sm:$0xff]
  %v178 = vld [vmem:[%s1 + $0x400] sm:$0xff]
  %v179 = vld [vmem:[%s1 + $0x408] sm:$0xff]
  %v180 = vld [vmem:[%s1 + $0x410] sm:$0xff]
  %v181 = vld [vmem:[%s1 + $0x418] sm:$0xff]
  %v182 = vld [vmem:[%s1 + $0x420] sm:$0xff]
  %v183 = vld [vmem:[%s1 + $0x428] sm:$0xff]
  %v184 = vld [vmem:[%s1 + $0x430] sm:$0xff]
  %v185 = vld [vmem:[%s1 + $0x438] sm:$0xff]
  %v186 = vld [vmem:[%s1 + $0x440] sm:$0xff]
  %v187 = vld [vmem:[%s1 + $0x448] sm:$0xff]
  %v188 = vld [vmem:[%s1 + $0x450] sm:$0xff]
  %v189 = vld [vmem:[%s1 + $0x458] sm:$0xff]
  %v190 = vld [vmem:[%s1 + $0x460] sm:$0xff]
  %v191 = vld [vmem:[%s1 + $0x468] sm:$0xff]
  %v192 = vld [vmem:[%s1 + $0x470] sm:$0xff]
  %v193 = vld [vmem:[%s1 + $0x478] sm:$0xff]
  %v194 = vld [vmem:[%s2] sm:$0x1]
  %v196 = vlaneseq
  %v197 = vshrl.u32 %v196, 7
  %v198 = vsub.s32 0, %v197
  %v199 = vrot.slane %v194, %v198
  %201 = vmatprep.subr.mxu0 0.0
  %202 = vmatpush1.msra.mxu0 %v50
  %203 = vmatprep.subr.mxu0 0.0
  %204 = vmatpush1.msra.mxu0 %v51
  %205 = vmatprep.subr.mxu0 0.0
  %206 = vmatpush1.msra.mxu0 %v52
  %207 = vmatprep.subr.mxu0 0.0
  %208 = vmatpush1.msra.mxu0 %v53
  %209 = vmatprep.subr.mxu0 0.0
  %210 = vmatpush1.msra.mxu0 %v54
  %211 = vmatprep.subr.mxu0 0.0
  %212 = vmatpush1.msra.mxu0 %v55
  %213 = vmatprep.subr.mxu0 0.0
  %214 = vmatpush1.msra.mxu0 %v56
  %215 = vmatprep.subr.mxu0 0.0
  %216 = vmatpush1.msra.mxu0 %v57
  %217 = vmatprep.subr.mxu0 0.0
  %218 = vmatpush1.msra.mxu0 %v58
  %219 = vmatprep.subr.mxu0 0.0
  %220 = vmatpush1.msra.mxu0 %v59
  %221 = vmatprep.subr.mxu0 0.0
  %222 = vmatpush1.msra.mxu0 %v60
  %223 = vmatprep.subr.mxu0 0.0
  %224 = vmatpush1.msra.mxu0 %v61
  %225 = vmatprep.subr.mxu0 0.0
  %226 = vmatpush1.msra.mxu0 %v62
  %227 = vmatprep.subr.mxu0 0.0
  %228 = vmatpush1.msra.mxu0 %v63
  %229 = vmatprep.subr.mxu0 0.0
  %230 = vmatpush1.msra.mxu0 %v64
  %231 = vmatprep.subr.mxu0 0.0
  %232 = vmatpush1.msra.mxu0 %v65
  %233 = vmatprep.subr.mxu0 0.0
  %234 = vmatpush1.msra.mxu0 %v66
  %235 = vmatprep.subr.mxu0 0.0
  %236 = vmatpush1.msra.mxu0 %v67
  %237 = vmatprep.subr.mxu0 0.0
  %238 = vmatpush1.msra.mxu0 %v68
  %239 = vmatprep.subr.mxu0 0.0
  %240 = vmatpush1.msra.mxu0 %v69
  %241 = vmatprep.subr.mxu0 0.0
  %242 = vmatpush1.msra.mxu0 %v70
  %243 = vmatprep.subr.mxu0 0.0
  %244 = vmatpush1.msra.mxu0 %v71
  %245 = vmatprep.subr.mxu0 0.0
  %246 = vmatpush1.msra.mxu0 %v72
  %247 = vmatprep.subr.mxu0 0.0
  %248 = vmatpush1.msra.mxu0 %v73
  %249 = vmatprep.subr.mxu0 0.0
  %250 = vmatpush1.msra.mxu0 %v74
  %251 = vmatprep.subr.mxu0 0.0
  %252 = vmatpush1.msra.mxu0 %v75
  %253 = vmatprep.subr.mxu0 0.0
  %254 = vmatpush1.msra.mxu0 %v76
  %255 = vmatprep.subr.mxu0 0.0
  %256 = vmatpush1.msra.mxu0 %v77
  %257 = vmatprep.subr.mxu0 0.0
  %258 = vmatpush1.msra.mxu0 %v78
  %259 = vmatprep.subr.mxu0 0.0
  %260 = vmatpush1.msra.mxu0 %v79
  %261 = vmatprep.subr.mxu0 0.0
  %262 = vmatpush1.msra.mxu0 %v80
  %263 = vmatprep.subr.mxu0 0.0
  %264 = vmatpush1.msra.mxu0 %v81
  %265 = vmatprep.mubr.f32.mxu0 %v15
  %266 = vmatmul.mubr.f32.gmra.mrb[0].mxu0 %v14
  %v267 = vpop.f32.mrb[0].mxu0
  %v268 = vadd.f32 %v199, %v267
  %v269 = vpop.f32.mrb[0].mxu0
  %270 = vmatprep.mubr.f32.mxu0 %v24
  %271 = vmatmul.mubr.f32.gmra.mrb[0].mxu0 %v23
  %v272 = vpop.f32.mrb[0].mxu0
  %v273 = vadd.f32 %v199, %v272
  %v274 = vpop.f32.mrb[0].mxu0
  %275 = vmatprep.mubr.f32.mxu0 %v33
  %276 = vmatmul.mubr.f32.gmra.mrb[0].mxu0 %v32
  %v277 = vpop.f32.mrb[0].mxu0
  %v278 = vadd.f32 %v199, %v277
  %v279 = vpop.f32.mrb[0].mxu0
  %280 = vmatprep.mubr.f32.mxu0 %v42
  %281 = vmatmul.mubr.f32.gmra.mrb[0].mxu0 %v41
  %v282 = vpop.f32.mrb[0].mxu0
  %v283 = vadd.f32 %v199, %v282
  %v284 = vpop.f32.mrb[0].mxu0
  %285 = vdwg.mxu0
  %286 = vmatprep.subr.mxu0 0.0
  %287 = vmatpush1.msra.mxu0 %v82
  %288 = vmatprep.subr.mxu0 0.0
  %289 = vmatpush1.msra.mxu0 %v83
  %290 = vmatprep.subr.mxu0 0.0
  %291 = vmatpush1.msra.mxu0 %v84
  %292 = vmatprep.subr.mxu0 0.0
  %293 = vmatpush1.msra.mxu0 %v85
  %294 = vmatprep.subr.mxu0 0.0
  %295 = vmatpush1.msra.mxu0 %v86
  %296 = vmatprep.subr.mxu0 0.0
  %297 = vmatpush1.msra.mxu0 %v87
  %298 = vmatprep.subr.mxu0 0.0
  %299 = vmatpush1.msra.mxu0 %v88
  %300 = vmatprep.subr.mxu0 0.0
  %301 = vmatpush1.msra.mxu0 %v89
  %302 = vmatprep.subr.mxu0 0.0
  %303 = vmatpush1.msra.mxu0 %v90
  %304 = vmatprep.subr.mxu0 0.0
  %305 = vmatpush1.msra.mxu0 %v91
  %306 = vmatprep.subr.mxu0 0.0
  %307 = vmatpush1.msra.mxu0 %v92
  %308 = vmatprep.subr.mxu0 0.0
  %309 = vmatpush1.msra.mxu0 %v93
  %310 = vmatprep.subr.mxu0 0.0
  %311 = vmatpush1.msra.mxu0 %v94
  %312 = vmatprep.subr.mxu0 0.0
  %313 = vmatpush1.msra.mxu0 %v95
  %314 = vmatprep.subr.mxu0 0.0
  %315 = vmatpush1.msra.mxu0 %v96
  %316 = vmatprep.subr.mxu0 0.0
  %317 = vmatpush1.msra.mxu0 %v97
  %318 = vmatprep.subr.mxu0 0.0
  %319 = vmatpush1.msra.mxu0 %v98
  %320 = vmatprep.subr.mxu0 0.0
  %321 = vmatpush1.msra.mxu0 %v99
  %322 = vmatprep.subr.mxu0 0.0
  %323 = vmatpush1.msra.mxu0 %v100
  %324 = vmatprep.subr.mxu0 0.0
  %325 = vmatpush1.msra.mxu0 %v101
  %326 = vmatprep.subr.mxu0 0.0
  %327 = vmatpush1.msra.mxu0 %v102
  %328 = vmatprep.subr.mxu0 0.0
  %329 = vmatpush1.msra.mxu0 %v103
  %330 = vmatprep.subr.mxu0 0.0
  %331 = vmatpush1.msra.mxu0 %v104
  %332 = vmatprep.subr.mxu0 0.0
  %333 = vmatpush1.msra.mxu0 %v105
  %334 = vmatprep.subr.mxu0 0.0
  %335 = vmatpush1.msra.mxu0 %v106
  %336 = vmatprep.subr.mxu0 0.0
  %337 = vmatpush1.msra.mxu0 %v107
  %338 = vmatprep.subr.mxu0 0.0
  %339 = vmatpush1.msra.mxu0 %v108
  %340 = vmatprep.subr.mxu0 0.0
  %341 = vmatpush1.msra.mxu0 %v109
  %342 = vmatprep.subr.mxu0 0.0
  %343 = vmatpush1.msra.mxu0 %v110
  %344 = vmatprep.subr.mxu0 0.0
  %345 = vmatpush1.msra.mxu0 %v111
  %346 = vmatprep.subr.mxu0 0.0
  %347 = vmatpush1.msra.mxu0 %v112
  %348 = vmatprep.subr.mxu0 0.0
  %349 = vmatpush1.msra.mxu0 %v113
  %350 = vmatprep.mubr.f32.mxu0 %v17
  %351 = vmatmul.mubr.f32.gmra.mrb[0].mxu0 %v16
  %v352 = vpop.f32.mrb[0].mxu0
  %v353 = vadd.f32 %v268, %v352
  %v354 = vpop.f32.mrb[0].mxu0
  %355 = vmatprep.mubr.f32.mxu0 %v26
  %356 = vmatmul.mubr.f32.gmra.mrb[0].mxu0 %v25
  %v357 = vpop.f32.mrb[0].mxu0
  %v358 = vadd.f32 %v273, %v357
  %v359 = vpop.f32.mrb[0].mxu0
  %360 = vmatprep.mubr.f32.mxu0 %v35
  %361 = vmatmul.mubr.f32.gmra.mrb[0].mxu0 %v34
  %v362 = vpop.f32.mrb[0].mxu0
  %v363 = vadd.f32 %v278, %v362
  %v364 = vpop.f32.mrb[0].mxu0
  %365 = vmatprep.mubr.f32.mxu0 %v44
  %366 = vmatmul.mubr.f32.gmra.mrb[0].mxu0 %v43
  %v367 = vpop.f32.mrb[0].mxu0
  %v368 = vadd.f32 %v283, %v367
  %v369 = vpop.f32.mrb[0].mxu0
  %370 = vdwg.mxu0
  %371 = vmatprep.subr.mxu0 0.0
  %372 = vmatpush1.msra.mxu0 %v114
  %373 = vmatprep.subr.mxu0 0.0
  %374 = vmatpush1.msra.mxu0 %v115
  %375 = vmatprep.subr.mxu0 0.0
  %376 = vmatpush1.msra.mxu0 %v116
  %377 = vmatprep.subr.mxu0 0.0
  %378 = vmatpush1.msra.mxu0 %v117
  %379 = vmatprep.subr.mxu0 0.0
  %380 = vmatpush1.msra.mxu0 %v118
  %381 = vmatprep.subr.mxu0 0.0
  %382 = vmatpush1.msra.mxu0 %v119
  %383 = vmatprep.subr.mxu0 0.0
  %384 = vmatpush1.msra.mxu0 %v120
  %385 = vmatprep.subr.mxu0 0.0
  %386 = vmatpush1.msra.mxu0 %v121
  %387 = vmatprep.subr.mxu0 0.0
  %388 = vmatpush1.msra.mxu0 %v122
  %389 = vmatprep.subr.mxu0 0.0
  %390 = vmatpush1.msra.mxu0 %v123
  %391 = vmatprep.subr.mxu0 0.0
  %392 = vmatpush1.msra.mxu0 %v124
  %393 = vmatprep.subr.mxu0 0.0
  %394 = vmatpush1.msra.mxu0 %v125
  %395 = vmatprep.subr.mxu0 0.0
  %396 = vmatpush1.msra.mxu0 %v126
  %397 = vmatprep.subr.mxu0 0.0
  %398 = vmatpush1.msra.mxu0 %v127
  %399 = vmatprep.subr.mxu0 0.0
  %400 = vmatpush1.msra.mxu0 %v128
  %401 = vmatprep.subr.mxu0 0.0
  %402 = vmatpush1.msra.mxu0 %v129
  %403 = vmatprep.subr.mxu0 0.0
  %404 = vmatpush1.msra.mxu0 %v130
  %405 = vmatprep.subr.mxu0 0.0
  %406 = vmatpush1.msra.mxu0 %v131
  %407 = vmatprep.subr.mxu0 0.0
  %408 = vmatpush1.msra.mxu0 %v132
  %409 = vmatprep.subr.mxu0 0.0
  %410 = vmatpush1.msra.mxu0 %v133
  %411 = vmatprep.subr.mxu0 0.0
  %412 = vmatpush1.msra.mxu0 %v134
  %413 = vmatprep.subr.mxu0 0.0
  %414 = vmatpush1.msra.mxu0 %v135
  %415 = vmatprep.subr.mxu0 0.0
  %416 = vmatpush1.msra.mxu0 %v136
  %417 = vmatprep.subr.mxu0 0.0
  %418 = vmatpush1.msra.mxu0 %v137
  %419 = vmatprep.subr.mxu0 0.0
  %420 = vmatpush1.msra.mxu0 %v138
  %421 = vmatprep.subr.mxu0 0.0
  %422 = vmatpush1.msra.mxu0 %v139
  %423 = vmatprep.subr.mxu0 0.0
  %424 = vmatpush1.msra.mxu0 %v140
  %425 = vmatprep.subr.mxu0 0.0
  %426 = vmatpush1.msra.mxu0 %v141
  %427 = vmatprep.subr.mxu0 0.0
  %428 = vmatpush1.msra.mxu0 %v142
  %429 = vmatprep.subr.mxu0 0.0
  %430 = vmatpush1.msra.mxu0 %v143
  %431 = vmatprep.subr.mxu0 0.0
  %432 = vmatpush1.msra.mxu0 %v144
  %433 = vmatprep.subr.mxu0 0.0
  %434 = vmatpush1.msra.mxu0 %v145
  %435 = vmatprep.mubr.f32.mxu0 %v19
  %436 = vmatmul.mubr.f32.gmra.mrb[0].mxu0 %v18
  %v437 = vpop.f32.mrb[0].mxu0
  %v438 = vadd.f32 %v353, %v437
  %v439 = vpop.f32.mrb[0].mxu0
  %440 = vmatprep.mubr.f32.mxu0 %v28
  %441 = vmatmul.mubr.f32.gmra.mrb[0].mxu0 %v27
  %v442 = vpop.f32.mrb[0].mxu0
  %v443 = vadd.f32 %v358, %v442
  %v444 = vpop.f32.mrb[0].mxu0
  %445 = vmatprep.mubr.f32.mxu0 %v37
  %446 = vmatmul.mubr.f32.gmra.mrb[0].mxu0 %v36
  %v447 = vpop.f32.mrb[0].mxu0
  %v448 = vadd.f32 %v363, %v447
  %v449 = vpop.f32.mrb[0].mxu0
  %450 = vmatprep.mubr.f32.mxu0 %v46
  %451 = vmatmul.mubr.f32.gmra.mrb[0].mxu0 %v45
  %v452 = vpop.f32.mrb[0].mxu0
  %v453 = vadd.f32 %v368, %v452
  %v454 = vpop.f32.mrb[0].mxu0
  %455 = vdwg.mxu0
  %456 = vmatprep.subr.mxu0 0.0
  %457 = vmatpush1.msra.mxu0 %v146
  %458 = vmatprep.subr.mxu0 0.0
  %459 = vmatpush1.msra.mxu0 %v147
  %460 = vmatprep.subr.mxu0 0.0
  %461 = vmatpush1.msra.mxu0 %v148
  %462 = vmatprep.subr.mxu0 0.0
  %463 = vmatpush1.msra.mxu0 %v149
  %464 = vmatprep.subr.mxu0 0.0
  %465 = vmatpush1.msra.mxu0 %v150
  %466 = vmatprep.subr.mxu0 0.0
  %467 = vmatpush1.msra.mxu0 %v151
  %468 = vmatprep.subr.mxu0 0.0
  %469 = vmatpush1.msra.mxu0 %v152
  %470 = vmatprep.subr.mxu0 0.0
  %471 = vmatpush1.msra.mxu0 %v153
  %472 = vmatprep.subr.mxu0 0.0
  %473 = vmatpush1.msra.mxu0 %v154
  %474 = vmatprep.subr.mxu0 0.0
  %475 = vmatpush1.msra.mxu0 %v155
  %476 = vmatprep.subr.mxu0 0.0
  %477 = vmatpush1.msra.mxu0 %v156
  %478 = vmatprep.subr.mxu0 0.0
  %479 = vmatpush1.msra.mxu0 %v157
  %480 = vmatprep.subr.mxu0 0.0
  %481 = vmatpush1.msra.mxu0 %v158
  %482 = vmatprep.subr.mxu0 0.0
  %483 = vmatpush1.msra.mxu0 %v159
  %484 = vmatprep.subr.mxu0 0.0
  %485 = vmatpush1.msra.mxu0 %v160
  %486 = vmatprep.subr.mxu0 0.0
  %487 = vmatpush1.msra.mxu0 %v161
  %488 = vmatprep.subr.mxu0 0.0
  %489 = vmatpush1.msra.mxu0 %v162
  %490 = vmatprep.subr.mxu0 0.0
  %491 = vmatpush1.msra.mxu0 %v163
  %492 = vmatprep.subr.mxu0 0.0
  %493 = vmatpush1.msra.mxu0 %v164
  %494 = vmatprep.subr.mxu0 0.0
  %495 = vmatpush1.msra.mxu0 %v165
  %496 = vmatprep.subr.mxu0 0.0
  %497 = vmatpush1.msra.mxu0 %v166
  %498 = vmatprep.subr.mxu0 0.0
  %499 = vmatpush1.msra.mxu0 %v167
  %500 = vmatprep.subr.mxu0 0.0
  %501 = vmatpush1.msra.mxu0 %v168
  %502 = vmatprep.subr.mxu0 0.0
  %503 = vmatpush1.msra.mxu0 %v169
  %504 = vmatprep.subr.mxu0 0.0
  %505 = vmatpush1.msra.mxu0 %v170
  %506 = vmatprep.subr.mxu0 0.0
  %507 = vmatpush1.msra.mxu0 %v171
  %508 = vmatprep.subr.mxu0 0.0
  %509 = vmatpush1.msra.mxu0 %v172
  %510 = vmatprep.subr.mxu0 0.0
  %511 = vmatpush1.msra.mxu0 %v173
  %512 = vmatprep.subr.mxu0 0.0
  %513 = vmatpush1.msra.mxu0 %v174
  %514 = vmatprep.subr.mxu0 0.0
  %515 = vmatpush1.msra.mxu0 %v175
  %516 = vmatprep.subr.mxu0 0.0
  %517 = vmatpush1.msra.mxu0 %v176
  %518 = vmatprep.subr.mxu0 0.0
  %519 = vmatpush1.msra.mxu0 %v177
  %520 = vmatprep.mubr.f32.mxu0 %v21
  %521 = vmatmul.mubr.f32.gmra.mrb[0].mxu0 %v20
  %v522 = vpop.f32.mrb[0].mxu0
  %v523 = vadd.f32 %v438, %v522
  %v524 = vpop.f32.mrb[0].mxu0
  %525 = vmatprep.mubr.f32.mxu0 %v30
  %526 = vmatmul.mubr.f32.gmra.mrb[0].mxu0 %v29
  %v527 = vpop.f32.mrb[0].mxu0
  %v528 = vadd.f32 %v443, %v527
  %v529 = vpop.f32.mrb[0].mxu0
  %530 = vmatprep.mubr.f32.mxu0 %v39
  %531 = vmatmul.mubr.f32.gmra.mrb[0].mxu0 %v38
  %v532 = vpop.f32.mrb[0].mxu0
  %v533 = vadd.f32 %v448, %v532
  %v534 = vpop.f32.mrb[0].mxu0
  %535 = vmatprep.mubr.f32.mxu0 %v48
  %536 = vmatmul.mubr.f32.gmra.mrb[0].mxu0 %v47
  %v537 = vpop.f32.mrb[0].mxu0
  %v538 = vadd.f32 %v453, %v537
  %v539 = vpop.f32.mrb[0].mxu0
  %540 = vdwg.mxu0
  %541 = vmatprep.subr.mxu0 0.0
  %542 = vmatpush1.msra.mxu0 %v178
  %543 = vmatprep.subr.mxu0 0.0
  %544 = vmatpush1.msra.mxu0 %v179
  %545 = vmatprep.subr.mxu0 0.0
  %546 = vmatpush1.msra.mxu0 %v180
  %547 = vmatprep.subr.mxu0 0.0
  %548 = vmatpush1.msra.mxu0 %v181
  %549 = vmatprep.subr.mxu0 0.0
  %550 = vmatpush1.msra.mxu0 %v182
  %551 = vmatprep.subr.mxu0 0.0
  %552 = vmatpush1.msra.mxu0 %v183
  %553 = vmatprep.subr.mxu0 0.0
  %554 = vmatpush1.msra.mxu0 %v184
  %555 = vmatprep.subr.mxu0 0.0
  %556 = vmatpush1.msra.mxu0 %v185
  %557 = vmatprep.subr.mxu0 0.0
  %558 = vmatpush1.msra.mxu0 %v186
  %559 = vmatprep.subr.mxu0 0.0
  %560 = vmatpush1.msra.mxu0 %v187
  %561 = vmatprep.subr.mxu0 0.0
  %562 = vmatpush1.msra.mxu0 %v188
  %563 = vmatprep.subr.mxu0 0.0
  %564 = vmatpush1.msra.mxu0 %v189
  %565 = vmatprep.subr.mxu0 0.0
  %566 = vmatpush1.msra.mxu0 %v190
  %567 = vmatprep.subr.mxu0 0.0
  %568 = vmatpush1.msra.mxu0 %v191
  %569 = vmatprep.subr.mxu0 0.0
  %570 = vmatpush1.msra.mxu0 %v192
  %571 = vmatprep.subr.mxu0 0.0
  %572 = vmatpush1.msra.mxu0 %v193
  %573 = vmatprep.subr.mxu0 0.0
  %574 = vmatpush1.msra.mxu0 0.0
  %575 = vmatprep.subr.mxu0 0.0
  %576 = vmatpush1.msra.mxu0 0.0
  %577 = vmatprep.subr.mxu0 0.0
  %578 = vmatpush1.msra.mxu0 0.0
  %579 = vmatprep.subr.mxu0 0.0
  %580 = vmatpush1.msra.mxu0 0.0
  %581 = vmatprep.subr.mxu0 0.0
  %582 = vmatpush1.msra.mxu0 0.0
  %583 = vmatprep.subr.mxu0 0.0
  %584 = vmatpush1.msra.mxu0 0.0
  %585 = vmatprep.subr.mxu0 0.0
  %586 = vmatpush1.msra.mxu0 0.0
  %587 = vmatprep.subr.mxu0 0.0
  %588 = vmatpush1.msra.mxu0 0.0
  %589 = vmatprep.subr.mxu0 0.0
  %590 = vmatpush1.msra.mxu0 0.0
  %591 = vmatprep.subr.mxu0 0.0
  %592 = vmatpush1.msra.mxu0 0.0
  %593 = vmatprep.subr.mxu0 0.0
  %594 = vmatpush1.msra.mxu0 0.0
  %595 = vmatprep.subr.mxu0 0.0
  %596 = vmatpush1.msra.mxu0 0.0
  %597 = vmatprep.subr.mxu0 0.0
  %598 = vmatpush1.msra.mxu0 0.0
  %599 = vmatprep.subr.mxu0 0.0
  %600 = vmatpush1.msra.mxu0 0.0
  %601 = vmatprep.subr.mxu0 0.0
  %602 = vmatpush1.msra.mxu0 0.0
  %603 = vmatprep.subr.mxu0 0.0
  %604 = vmatpush1.msra.mxu0 0.0
  %605 = vmatprep.mubr.f32.mxu0 0.0
  %606 = vmatmul.mubr.f32.gmra.mrb[0].mxu0 %v22
  %v607 = vpop.f32.mrb[0].mxu0
  %v608 = vadd.f32 %v523, %v607
  %v609 = vpop.f32.mrb[0].mxu0
  %610 = vmatprep.mubr.f32.mxu0 0.0
  %611 = vmatmul.mubr.f32.gmra.mrb[0].mxu0 %v31
  %v612 = vpop.f32.mrb[0].mxu0
  %v613 = vadd.f32 %v528, %v612
  %v614 = vpop.f32.mrb[0].mxu0
  %615 = vmatprep.mubr.f32.mxu0 0.0
  %616 = vmatmul.mubr.f32.gmra.mrb[0].mxu0 %v40
  %v617 = vpop.f32.mrb[0].mxu0
  %v618 = vadd.f32 %v533, %v617
  %v619 = vpop.f32.mrb[0].mxu0
  %620 = vmatprep.mubr.f32.mxu0 0.0
  %621 = vmatmul.mubr.f32.gmra.mrb[0].mxu0 %v49
  %v622 = vpop.f32.mrb[0].mxu0
  %v623 = vadd.f32 %v538, %v622
  %v624 = vpop.f32.mrb[0].mxu0
  %625 = vdwg.mxu0
  %630 = vrot.lane.b32.xlu0 %v608, 96
  %v631 = vpop.permute.xlu0 %630
  %632 = vrot.lane.b32.xlu0 %v613, 96
  %v633 = vpop.permute.xlu0 %632
  %634 = vrot.lane.b32.xlu0 %v618, 96
  %v635 = vpop.permute.xlu0 %634
  %636 = vrot.lane.b32.xlu0 %v623, 96
  %v637 = vpop.permute.xlu0 %636
  %v642 = vmax.f32 %v608, %v631
  %v643 = vmax.f32 %v613, %v633
  %v644 = vmax.f32 %v618, %v635
  %v645 = vmax.f32 %v623, %v637
  %650 = vrot.lane.b32.xlu0 %v642, 64
  %v651 = vpop.permute.xlu0 %650
  %652 = vrot.lane.b32.xlu0 %v643, 64
  %v653 = vpop.permute.xlu0 %652
  %654 = vrot.lane.b32.xlu0 %v644, 64
  %v655 = vpop.permute.xlu0 %654
  %656 = vrot.lane.b32.xlu0 %v645, 64
  %v657 = vpop.permute.xlu0 %656
  %v662 = vmax.f32 %v642, %v651
  %v663 = vmax.f32 %v643, %v653
  %v664 = vmax.f32 %v644, %v655
  %v665 = vmax.f32 %v645, %v657
  %v666 = vsub.f32 0.0, %v662
  %v667 = vsub.f32 0.0, %v663
  %v668 = vsub.f32 0.0, %v664
  %v669 = vsub.f32 0.0, %v665
  %v670 = vmul.f32 %v666, 1.442695
  %v671 = vpow.pop %v670
  %v672 = vmul.f32 %v667, 1.442695
  %v673 = vpow.pop %v672
  %v674 = vmul.f32 %v668, 1.442695
  %v675 = vpow.pop %v674
  %v676 = vmul.f32 %v669, 1.442695
  %v677 = vpow.pop %v676
  %v678 = vadd.f32 %v671, 1.0
  %v679 = vadd.f32 %v673, 1.0
  %v680 = vadd.f32 %v675, 1.0
  %v681 = vadd.f32 %v677, 1.0
  %v682 = vrcp.pop %v678
  %v683 = vrcp.pop %v679
  %v684 = vrcp.pop %v680
  %v685 = vrcp.pop %v681
  %vm686 = vcmask 162816
  %687 = vst.msk [vmem:[%s3] sm:$0xff] %vm686, %v682
  %688 = vst.msk [vmem:[%s3 + $0x8] sm:$0xff] %vm686, %v683
  %689 = vst.msk [vmem:[%s3 + $0x10] sm:$0xff] %vm686, %v684
  %690 = vst.msk [vmem:[%s3 + $0x18] sm:$0xff] %vm686, %v685
  // Predicated region
  $region14: #{feature_extractor_forward.3} parent=0 // pred_check
    _
  $region15: #{feature_extractor_forward.3} parent=0 // pred_check_branch
    %692 = sbr.rel (0) target = $region17
  $region16: #{feature_extractor_forward.3} parent=0 // pred_region
    _
  $region17: #{feature_extractor_forward.3} parent=0 // pred_fallthru
    _
  // Predicated region
  $region18: #{feature_extractor_forward.3} parent=0 // pred_check
    _
  $region19: #{feature_extractor_forward.3} parent=0 // pred_check_branch
    %694 = sbr.rel (0) target = $region21
  $region20: #{feature_extractor_forward.3} parent=0 // pred_region
    _
  $region21: #{feature_extractor_forward.3} parent=0 // pred_fallthru
    _

</llo_original>
